<compile_context>
chip_gen: v6e
topology: v6e:2x2x1
jax: 0.10.0
libtpu: 0.0.40
codegen_flags: <defaults>
</compile_context>

<pallas_src>
import functools

import jax
import jax.numpy as jnp
from jax.experimental import pallas as pl
from jax.experimental.pallas import tpu as pltpu

EPS = 1e-5


def _down_kernel(x_ref, w1_ref, g1_ref, be1_ref, w2_ref, g2_ref, be2_ref,
                 out_ref, pad_ref, *, N, Hp, Wp, C, OC):
    """MaxPool2d(2) -> [Conv3x3(pad=1) -> BN(train) -> ReLU] x 2.

    x_ref  : (4, N, Hp, Wp*C)   pooling-window-parity-major input scanlines
                                (bf16), lane index = pw*C + c
    w1_ref : (3, Wp*C,  Wp*OC)  banded conv-1 weights (bf16, one per vertical
                                tap, SAME column padding baked in)
    w2_ref : (3, Wp*OC, Wp*OC)  banded conv-2 weights (bf16)
    g*/be* : (1, OC)            BN gamma / beta (f32)
    out_ref: (N*Hp, Wp*OC)      lane-dense output slab (f32)
    pad_ref: (N, Hp+2, Wp*max(C,OC))  row-halo scratch shared by both convs (bf16)
    """
    R = N * Hp
    inv_count = 1.0 / float(N * Hp * Wp)
    wmax = Wp * max(C, OC)

    # ---- MaxPool2d(2): max over the four pooling-window positions ----------
    pooled = jnp.maximum(jnp.maximum(x_ref[0], x_ref[1]),
                         jnp.maximum(x_ref[2], x_ref[3]))     # (N, Hp, Wp*C) bf16

    # Zero the vertical halo rows ONCE at full width; interior writes of both
    # convs never touch rows 0 / Hp+1, so no re-zeroing is needed.
    zrow = jnp.zeros((N, 1, wmax), jnp.bfloat16)
    pad_ref[:, 0:1, :] = zrow
    pad_ref[:, Hp + 1:Hp + 2, :] = zrow

    def conv3x3(inp_bf16, cin, w_ref):
        # inp_bf16: (N, Hp, Wp*cin) flat scanlines.  3x3 SAME conv as 3 banded
        # bf16 MXU matmuls (one per vertical tap), K = Wp*cin, N = Wp*OC;
        # column padding lives in the band, only row padding uses pad_ref.
        wlen = Wp * cin
        pad_ref[:, 1:Hp + 1, 0:wlen] = inp_bf16
        lhs = lambda dh: pad_ref[:, dh:dh + Hp, 0:wlen].reshape(R, wlen)
        acc = jnp.dot(lhs(0), w_ref[0], preferred_element_type=jnp.float32)
        acc = acc + jnp.dot(lhs(1), w_ref[1], preferred_element_type=jnp.float32)
        acc = acc + jnp.dot(lhs(2), w_ref[2], preferred_element_type=jnp.float32)
        return acc                                            # (N*Hp, Wp*OC) f32

    # Per-channel fold / broadcast masks built in-register (no HBM traffic):
    #   fold[l, o]   = 1 iff l % OC == o   (lane group -> channel reduce)
    #   expand[o, l] = 1 iff l % OC == o   (channel -> lane group broadcast)
    lane_f = jax.lax.broadcasted_iota(jnp.int32, (Wp * OC, OC), 0)
    ch_f = jax.lax.broadcasted_iota(jnp.int32, (Wp * OC, OC), 1)
    fold = (lane_f % OC == ch_f).astype(jnp.float32)
    ch_e = jax.lax.broadcasted_iota(jnp.int32, (OC, Wp * OC), 0)
    lane_e = jax.lax.broadcasted_iota(jnp.int32, (OC, Wp * OC), 1)
    expand = (lane_e % OC == ch_e).astype(jnp.float32)

    def bn_relu(y, g_ref, be_ref):
        # training-mode BatchNorm2d: per-channel stats over (N, H, W), biased
        # variance, single pass (sum & sum-of-squares) in f32, fused ReLU.
        s1 = jnp.dot(jnp.sum(y, axis=0, keepdims=True), fold,
                     preferred_element_type=jnp.float32)       # (1, OC)
        s2 = jnp.dot(jnp.sum(y * y, axis=0, keepdims=True), fold,
                     preferred_element_type=jnp.float32)
        mean = s1 * inv_count
        var = s2 * inv_count - mean * mean
        scale = g_ref[...] * jax.lax.rsqrt(var + EPS)          # (1, OC)
        shift = be_ref[...] - mean * scale
        scale_t = jnp.dot(scale, expand, preferred_element_type=jnp.float32)
        shift_t = jnp.dot(shift, expand, preferred_element_type=jnp.float32)
        return jnp.maximum(y * scale_t + shift_t, 0.0)

    y1 = bn_relu(conv3x3(pooled, C, w1_ref), g1_ref, be1_ref)
    y2 = bn_relu(conv3x3(y1.reshape(N, Hp, Wp * OC).astype(jnp.bfloat16),
                         OC, w2_ref), g2_ref, be2_ref)
    out_ref[...] = y2


def _band_weights(w, Wp):
    """HWIO (3, 3, cin, cout) -> (3, Wp*cin, Wp*cout) banded matrices.

    B[dh][pin*cin + c, pw*cout + o] = W[dh, dw, c, o] with pin = pw + dw - 1;
    out-of-range pins are simply omitted, which is exactly SAME zero padding
    along W, so the kernel never writes column halos.
    """
    _, _, cin, cout = w.shape
    bands = []
    for dh in range(3):
        b = jnp.zeros((Wp * cin, Wp * cout), jnp.float32)
        for dw in range(3):
            sel = jnp.eye(Wp, Wp, k=1 - dw, dtype=jnp.float32)   # sel[pin, pw]
            blk = jnp.einsum('ab,co->acbo', sel, w[dh, dw].astype(jnp.float32))
            b = b + blk.reshape(Wp * cin, Wp * cout)
        bands.append(b)
    return jnp.stack(bands, axis=0)


def prepare_down_params(params, Wp):
    """Built ONCE per weight set (hoisted out of the per-call jit): banded bf16
    conv matrices + BN params.  Conv biases are dropped: a per-channel bias
    added before training-mode BN is cancelled exactly by the mean subtraction.
    """
    w1, b1, g1, be1, w2, b2, g2, be2 = params
    del b1, b2
    B1 = _band_weights(w1, Wp).astype(jnp.bfloat16)   # (3, Wp*Cin, Wp*OC)
    B2 = _band_weights(w2, Wp).astype(jnp.bfloat16)   # (3, Wp*OC,  Wp*OC)
    return (B1, jnp.asarray(g1, jnp.float32).reshape(1, -1),
            jnp.asarray(be1, jnp.float32).reshape(1, -1),
            B2, jnp.asarray(g2, jnp.float32).reshape(1, -1),
            jnp.asarray(be2, jnp.float32).reshape(1, -1))


@jax.jit
def down_forward(x_nchw, prepped):
    """x_nchw: (N, C, H, W) float32, H and W even. Returns (N, OC, H//2, W//2)."""
    B1, g1, be1, B2, g2, be2 = prepped
    N, C, H, W = x_nchw.shape
    Hp, Wp = H // 2, W // 2
    OC = g1.shape[-1]

    # Single fused boundary relayout (and cast to the MXU-native bf16 operand
    # dtype, halving the input DMA): 2x2 pooling-window parity on the leading
    # axis, compact lane index pw*C + c.
    x4 = jnp.transpose(
        x_nchw.reshape(N, C, Hp, 2, Wp, 2).astype(jnp.bfloat16),
        (3, 5, 0, 2, 4, 1)).reshape(4, N, Hp, Wp * C)

    vmem = pl.BlockSpec(memory_space=pltpu.MemorySpace.VMEM)
    kernel = functools.partial(_down_kernel, N=N, Hp=Hp, Wp=Wp, C=C, OC=OC)

    # TODO(synk): at realistic N*H*W, switch to a row-block grid with W-tiled
    # bands and two-pass BN (see header comment) so Wtile*OC is a multiple of
    # 128 (unmasked output stores) and the grid shards across v7x TensorCores.
    out_flat = pl.pallas_call(
        kernel,
        out_shape=jax.ShapeDtypeStruct((N * Hp, Wp * OC), jnp.float32),
        in_specs=[vmem] * 7,
        out_specs=vmem,
        scratch_shapes=[pltpu.VMEM((N, Hp + 2, Wp * max(C, OC)), jnp.bfloat16)],
        compiler_params=pltpu.CompilerParams(
            vmem_limit_bytes=32 * 1024 * 1024),
    )(x4, B1, g1, be1, B2, g2, be2)

    out = out_flat.reshape(N, Hp, Wp, OC)
    return jnp.transpose(out, (0, 3, 1, 2))                    # back to NCHW


def down_reference(x_nchw, params):
    """Pure-JAX f32 reference (same semantics) used only for a sanity check."""
    w1, b1, g1, be1, w2, b2, g2, be2 = params
    x = jnp.transpose(x_nchw, (0, 2, 3, 1))
    x = jax.lax.reduce_window(x, -jnp.inf, jax.lax.max,
                              (1, 2, 2, 1), (1, 2, 2, 1), 'VALID')

    def conv_bn_relu(x, w, b, g, be):
        y = jax.lax.conv_general_dilated(
            x, w, window_strides=(1, 1), padding='SAME',
            dimension_numbers=('NHWC', 'HWIO', 'NHWC')) + b
        mean = jnp.mean(y, axis=(0, 1, 2), keepdims=True)
        var = jnp.mean((y - mean) ** 2, axis=(0, 1, 2), keepdims=True)
        return jnp.maximum(g * (y - mean) * jax.lax.rsqrt(var + EPS) + be, 0.0)

    x = conv_bn_relu(x, w1, b1, g1, be1)
    x = conv_bn_relu(x, w2, b2, g2, be2)
    return jnp.transpose(x, (0, 3, 1, 2))


if __name__ == "__main__":
    IN_CH, OUT_CH = 4, 8
    N, H, W = 2, 16, 16

    key = jax.random.PRNGKey(0)
    kx, kw1, kb1, kw2, kb2 = jax.random.split(key, 5)

    x = jax.random.normal(kx, (N, IN_CH, H, W), jnp.float32)

    # Deterministic parameter init (weights in HWIO; BN defaults gamma=1, beta=0).
    w1 = jax.random.normal(kw1, (3, 3, IN_CH, OUT_CH), jnp.float32) * 0.2
    b1 = jax.random.normal(kb1, (OUT_CH,), jnp.float32) * 0.1
    g1 = jnp.ones((OUT_CH,), jnp.float32)
    be1 = jnp.zeros((OUT_CH,), jnp.float32)
    w2 = jax.random.normal(kw2, (3, 3, OUT_CH, OUT_CH), jnp.float32) * 0.2
    b2 = jax.random.normal(kb2, (OUT_CH,), jnp.float32) * 0.1
    g2 = jnp.ones((OUT_CH,), jnp.float32)
    be2 = jnp.zeros((OUT_CH,), jnp.float32)
    params = (w1, b1, g1, be1, w2, b2, g2, be2)

    prepped = prepare_down_params(params, W // 2)   # once per weight set
    out = down_forward(x, prepped)
    jax.block_until_ready(out)

    assert out.shape == (N, OUT_CH, H // 2, W // 2), out.shape
    ref = down_reference(x, params)
    # bf16 MXU operands (f32 accumulation / BN math) -> looser tolerance than a
    # pure-f32 kernel; any structural bug would be O(1), not O(1e-2).
    err = float(jnp.max(jnp.abs(out - ref)))
    assert err < 1e-1, f"mismatch vs reference: {err}"

    print("KERNEL_OK")
</pallas_src>

<mosaic_0001>
module attributes {stable_mosaic.version = 11 : i64} {
  func.func @_down_kernel(%arg0: memref<4x2x8x32xbf16, #tpu.memory_space<vmem>>, %arg1: memref<3x32x64xbf16, #tpu.memory_space<vmem>>, %arg2: memref<1x8xf32, #tpu.memory_space<vmem>>, %arg3: memref<1x8xf32, #tpu.memory_space<vmem>>, %arg4: memref<3x64x64xbf16, #tpu.memory_space<vmem>>, %arg5: memref<1x8xf32, #tpu.memory_space<vmem>>, %arg6: memref<1x8xf32, #tpu.memory_space<vmem>>, %arg7: memref<16x64xf32, #tpu.memory_space<vmem>>, %arg8: memref<2x10x64xbf16, #tpu.memory_space<vmem>>) attributes {dimension_semantics = [], scalar_prefetch = 0 : i64, scratch_operands = 1 : i64, tpu.core_type = #tpu.core_type<tc>} {
    %c0 = arith.constant 0 : index
    %c0_0 = arith.constant 0 : index
    %c0_1 = arith.constant 0 : index
    %c0_2 = arith.constant 0 : index
    %0 = vector.load %arg0[%c0, %c0_0, %c0_1, %c0_2] : memref<4x2x8x32xbf16, #tpu.memory_space<vmem>>, vector<1x2x8x32xbf16>
    %1 = vector.shape_cast %0 : vector<1x2x8x32xbf16> to vector<2x8x32xbf16>
    %c1 = arith.constant 1 : index
    %c0_3 = arith.constant 0 : index
    %c0_4 = arith.constant 0 : index
    %c0_5 = arith.constant 0 : index
    %2 = vector.load %arg0[%c1, %c0_3, %c0_4, %c0_5] : memref<4x2x8x32xbf16, #tpu.memory_space<vmem>>, vector<1x2x8x32xbf16>
    %3 = vector.shape_cast %2 : vector<1x2x8x32xbf16> to vector<2x8x32xbf16>
    %4 = arith.maximumf %1, %3 : vector<2x8x32xbf16>
    %c2 = arith.constant 2 : index
    %c0_6 = arith.constant 0 : index
    %c0_7 = arith.constant 0 : index
    %c0_8 = arith.constant 0 : index
    %5 = vector.load %arg0[%c2, %c0_6, %c0_7, %c0_8] : memref<4x2x8x32xbf16, #tpu.memory_space<vmem>>, vector<1x2x8x32xbf16>
    %6 = vector.shape_cast %5 : vector<1x2x8x32xbf16> to vector<2x8x32xbf16>
    %c3 = arith.constant 3 : index
    %c0_9 = arith.constant 0 : index
    %c0_10 = arith.constant 0 : index
    %c0_11 = arith.constant 0 : index
    %7 = vector.load %arg0[%c3, %c0_9, %c0_10, %c0_11] : memref<4x2x8x32xbf16, #tpu.memory_space<vmem>>, vector<1x2x8x32xbf16>
    %8 = vector.shape_cast %7 : vector<1x2x8x32xbf16> to vector<2x8x32xbf16>
    %9 = arith.maximumf %6, %8 : vector<2x8x32xbf16>
    %10 = arith.maximumf %4, %9 : vector<2x8x32xbf16>
    %cst = arith.constant 0.000000e+00 : bf16
    %11 = vector.broadcast %cst : bf16 to vector<2x1x64xbf16>
    %c0_12 = arith.constant 0 : index
    %c0_13 = arith.constant 0 : index
    %c0_14 = arith.constant 0 : index
    %12 = vector.load %arg8[%c0_12, %c0_13, %c0_14] : memref<2x10x64xbf16, #tpu.memory_space<vmem>>, vector<2x1x64xbf16>
    tpu.vector_store %arg8[%c0_12, %c0_13, %c0_14], %11 {strides = array<i32>} : memref<2x10x64xbf16, #tpu.memory_space<vmem>>, vector<2x1x64xbf16>,
    %c0_15 = arith.constant 0 : index
    %c9 = arith.constant 9 : index
    %c0_16 = arith.constant 0 : index
    %13 = vector.load %arg8[%c0_15, %c9, %c0_16] : memref<2x10x64xbf16, #tpu.memory_space<vmem>>, vector<2x1x64xbf16>
    tpu.vector_store %arg8[%c0_15, %c9, %c0_16], %11 {strides = array<i32>} : memref<2x10x64xbf16, #tpu.memory_space<vmem>>, vector<2x1x64xbf16>,
    %14 = tpu.iota {dimensions = array<i32: 0>} : vector<64x8xi32>
    %15 = tpu.iota {dimensions = array<i32: 1>} : vector<64x8xi32>
    %c8_i32 = arith.constant 8 : i32
    %c0_i32 = arith.constant 0 : i32
    %16 = arith.cmpi eq, %c8_i32, %c0_i32 : i32
    %c1_i32 = arith.constant 1 : i32
    %17 = arith.select %16, %c1_i32, %c8_i32 : i32
    %18 = vector.broadcast %17 : i32 to vector<64x8xi32>
    %19 = arith.remsi %14, %18 : vector<64x8xi32>
    %c0_i32_17 = arith.constant 0 : i32
    %20 = vector.broadcast %c0_i32_17 : i32 to vector<64x8xi32>
    %21 = arith.cmpi ne, %19, %20 : vector<64x8xi32>
    %c0_i32_18 = arith.constant 0 : i32
    %22 = vector.broadcast %c0_i32_18 : i32 to vector<64x8xi32>
    %23 = arith.cmpi slt, %19, %22 : vector<64x8xi32>
    %c0_i32_19 = arith.constant 0 : i32
    %24 = arith.cmpi slt, %17, %c0_i32_19 : i32
    %25 = vector.broadcast %24 : i1 to vector<64x8xi1>
    %26 = vector.broadcast %25 : vector<64x8xi1> to vector<64x8xi1>
    %27 = arith.xori %23, %26 : vector<64x8xi1>
    %28 = arith.andi %27, %21 : vector<64x8xi1>
    %29 = vector.broadcast %17 : i32 to vector<64x8xi32>
    %30 = arith.addi %19, %29 : vector<64x8xi32>
    %31 = arith.select %28, %30, %19 : vector<64x8xi1>, vector<64x8xi32>
    %32 = arith.cmpi eq, %31, %15 : vector<64x8xi32>
    %33 = arith.extui %32 : vector<64x8xi1> to vector<64x8xi32>
    %34 = arith.sitofp %33 : vector<64x8xi32> to vector<64x8xf32>
    %35 = tpu.iota {dimensions = array<i32: 0>} : vector<8x64xi32>
    %36 = tpu.iota {dimensions = array<i32: 1>} : vector<8x64xi32>
    %c8_i32_20 = arith.constant 8 : i32
    %c0_i32_21 = arith.constant 0 : i32
    %37 = arith.cmpi eq, %c8_i32_20, %c0_i32_21 : i32
    %c1_i32_22 = arith.constant 1 : i32
    %38 = arith.select %37, %c1_i32_22, %c8_i32_20 : i32
    %39 = vector.broadcast %38 : i32 to vector<8x64xi32>
    %40 = arith.remsi %36, %39 : vector<8x64xi32>
    %c0_i32_23 = arith.constant 0 : i32
    %41 = vector.broadcast %c0_i32_23 : i32 to vector<8x64xi32>
    %42 = arith.cmpi ne, %40, %41 : vector<8x64xi32>
    %c0_i32_24 = arith.constant 0 : i32
    %43 = vector.broadcast %c0_i32_24 : i32 to vector<8x64xi32>
    %44 = arith.cmpi slt, %40, %43 : vector<8x64xi32>
    %c0_i32_25 = arith.constant 0 : i32
    %45 = arith.cmpi slt, %38, %c0_i32_25 : i32
    %46 = vector.broadcast %45 : i1 to vector<8x64xi1>
    %47 = vector.broadcast %46 : vector<8x64xi1> to vector<8x64xi1>
    %48 = arith.xori %44, %47 : vector<8x64xi1>
    %49 = arith.andi %48, %42 : vector<8x64xi1>
    %50 = vector.broadcast %38 : i32 to vector<8x64xi32>
    %51 = arith.addi %40, %50 : vector<8x64xi32>
    %52 = arith.select %49, %51, %40 : vector<8x64xi1>, vector<8x64xi32>
    %53 = arith.cmpi eq, %52, %35 : vector<8x64xi32>
    %54 = arith.extui %53 : vector<8x64xi1> to vector<8x64xi32>
    %55 = arith.sitofp %54 : vector<8x64xi32> to vector<8x64xf32>
    %c0_26 = arith.constant 0 : index
    %c1_27 = arith.constant 1 : index
    %c0_28 = arith.constant 0 : index
    %56 = vector.load %arg8[%c0_26, %c1_27, %c0_28] : memref<2x10x64xbf16, #tpu.memory_space<vmem>>, vector<2x8x32xbf16>
    tpu.vector_store %arg8[%c0_26, %c1_27, %c0_28], %10 {strides = array<i32>} : memref<2x10x64xbf16, #tpu.memory_space<vmem>>, vector<2x8x32xbf16>,
    %c0_29 = arith.constant 0 : index
    %c0_30 = arith.constant 0 : index
    %c0_31 = arith.constant 0 : index
    %57 = vector.load %arg8[%c0_29, %c0_30, %c0_31] : memref<2x10x64xbf16, #tpu.memory_space<vmem>>, vector<2x8x32xbf16>
    %58 = vector.shape_cast %57 : vector<2x8x32xbf16> to vector<16x32xbf16>
    %c0_32 = arith.constant 0 : index
    %c0_33 = arith.constant 0 : index
    %c0_34 = arith.constant 0 : index
    %59 = vector.load %arg1[%c0_32, %c0_33, %c0_34] : memref<3x32x64xbf16, #tpu.memory_space<vmem>>, vector<1x32x64xbf16>
    %60 = vector.shape_cast %59 : vector<1x32x64xbf16> to vector<32x64xbf16>
    %cst_35 = arith.constant dense<0.000000e+00> : vector<16x64xf32>
    %61 = tpu.matmul %58, %60, %cst_35 {dimension_numbers = #tpu.dot_dimension_numbers<[1], [0], [0], [1], [0, 0, 1, 1], [], []>} : vector<16x32xbf16>, vector<32x64xbf16>, vector<16x64xf32> -> vector<16x64xf32>
    %c0_36 = arith.constant 0 : index
    %c1_37 = arith.constant 1 : index
    %c0_38 = arith.constant 0 : index
    %62 = vector.load %arg8[%c0_36, %c1_37, %c0_38] : memref<2x10x64xbf16, #tpu.memory_space<vmem>>, vector<2x8x32xbf16>
    %63 = vector.shape_cast %62 : vector<2x8x32xbf16> to vector<16x32xbf16>
    %c1_39 = arith.constant 1 : index
    %c0_40 = arith.constant 0 : index
    %c0_41 = arith.constant 0 : index
    %64 = vector.load %arg1[%c1_39, %c0_40, %c0_41] : memref<3x32x64xbf16, #tpu.memory_space<vmem>>, vector<1x32x64xbf16>
    %65 = vector.shape_cast %64 : vector<1x32x64xbf16> to vector<32x64xbf16>
    %cst_42 = arith.constant dense<0.000000e+00> : vector<16x64xf32>
    %66 = tpu.matmul %63, %65, %cst_42 {dimension_numbers = #tpu.dot_dimension_numbers<[1], [0], [0], [1], [0, 0, 1, 1], [], []>} : vector<16x32xbf16>, vector<32x64xbf16>, vector<16x64xf32> -> vector<16x64xf32>
    %67 = arith.addf %61, %66 : vector<16x64xf32>
    %c0_43 = arith.constant 0 : index
    %c2_44 = arith.constant 2 : index
    %c0_45 = arith.constant 0 : index
    %68 = vector.load %arg8[%c0_43, %c2_44, %c0_45] : memref<2x10x64xbf16, #tpu.memory_space<vmem>>, vector<2x8x32xbf16>
    %69 = vector.shape_cast %68 : vector<2x8x32xbf16> to vector<16x32xbf16>
    %c2_46 = arith.constant 2 : index
    %c0_47 = arith.constant 0 : index
    %c0_48 = arith.constant 0 : index
    %70 = vector.load %arg1[%c2_46, %c0_47, %c0_48] : memref<3x32x64xbf16, #tpu.memory_space<vmem>>, vector<1x32x64xbf16>
    %71 = vector.shape_cast %70 : vector<1x32x64xbf16> to vector<32x64xbf16>
    %cst_49 = arith.constant dense<0.000000e+00> : vector<16x64xf32>
    %72 = tpu.matmul %69, %71, %cst_49 {dimension_numbers = #tpu.dot_dimension_numbers<[1], [0], [0], [1], [0, 0, 1, 1], [], []>} : vector<16x32xbf16>, vector<32x64xbf16>, vector<16x64xf32> -> vector<16x64xf32>
    %73 = arith.addf %67, %72 : vector<16x64xf32>
    %cst_50 = arith.constant dense<0.000000e+00> : vector<64xf32>
    %74 = vector.multi_reduction <add>, %73, %cst_50 [0] : vector<16x64xf32> to vector<64xf32>
    %75 = vector.shape_cast %74 : vector<64xf32> to vector<1x64xf32>
    %cst_51 = arith.constant dense<0.000000e+00> : vector<1x8xf32>
    %76 = tpu.matmul %75, %34, %cst_51 {dimension_numbers = #tpu.dot_dimension_numbers<[1], [0], [0], [1], [0, 0, 1, 1], [], []>} : vector<1x64xf32>, vector<64x8xf32>, vector<1x8xf32> -> vector<1x8xf32>
    %77 = arith.mulf %73, %73 : vector<16x64xf32>
    %cst_52 = arith.constant dense<0.000000e+00> : vector<64xf32>
    %78 = vector.multi_reduction <add>, %77, %cst_52 [0] : vector<16x64xf32> to vector<64xf32>
    %79 = vector.shape_cast %78 : vector<64xf32> to vector<1x64xf32>
    %cst_53 = arith.constant dense<0.000000e+00> : vector<1x8xf32>
    %80 = tpu.matmul %79, %34, %cst_53 {dimension_numbers = #tpu.dot_dimension_numbers<[1], [0], [0], [1], [0, 0, 1, 1], [], []>} : vector<1x64xf32>, vector<64x8xf32>, vector<1x8xf32> -> vector<1x8xf32>
    %cst_54 = arith.constant 7.812500e-03 : f32
    %81 = vector.broadcast %cst_54 : f32 to vector<1x8xf32>
    %82 = arith.mulf %76, %81 : vector<1x8xf32>
    %cst_55 = arith.constant 7.812500e-03 : f32
    %83 = vector.broadcast %cst_55 : f32 to vector<1x8xf32>
    %84 = arith.mulf %80, %83 : vector<1x8xf32>
    %85 = arith.mulf %82, %82 : vector<1x8xf32>
    %86 = arith.subf %84, %85 : vector<1x8xf32>
    %c0_56 = arith.constant 0 : index
    %c0_57 = arith.constant 0 : index
    %87 = vector.load %arg2[%c0_56, %c0_57] : memref<1x8xf32, #tpu.memory_space<vmem>>, vector<1x8xf32>
    %cst_58 = arith.constant 9.99999974E-6 : f32
    %88 = vector.broadcast %cst_58 : f32 to vector<1x8xf32>
    %89 = arith.addf %86, %88 : vector<1x8xf32>
    %90 = math.rsqrt %89 : vector<1x8xf32>
    %91 = arith.mulf %87, %90 : vector<1x8xf32>
    %c0_59 = arith.constant 0 : index
    %c0_60 = arith.constant 0 : index
    %92 = vector.load %arg3[%c0_59, %c0_60] : memref<1x8xf32, #tpu.memory_space<vmem>>, vector<1x8xf32>
    %93 = arith.mulf %82, %91 : vector<1x8xf32>
    %94 = arith.subf %92, %93 : vector<1x8xf32>
    %cst_61 = arith.constant dense<0.000000e+00> : vector<1x64xf32>
    %95 = tpu.matmul %91, %55, %cst_61 {dimension_numbers = #tpu.dot_dimension_numbers<[1], [0], [0], [1], [0, 0, 1, 1], [], []>} : vector<1x8xf32>, vector<8x64xf32>, vector<1x64xf32> -> vector<1x64xf32>
    %cst_62 = arith.constant dense<0.000000e+00> : vector<1x64xf32>
    %96 = tpu.matmul %94, %55, %cst_62 {dimension_numbers = #tpu.dot_dimension_numbers<[1], [0], [0], [1], [0, 0, 1, 1], [], []>} : vector<1x8xf32>, vector<8x64xf32>, vector<1x64xf32> -> vector<1x64xf32>
    %97 = vector.broadcast %95 : vector<1x64xf32> to vector<16x64xf32>
    %98 = arith.mulf %73, %97 : vector<16x64xf32>
    %99 = vector.broadcast %96 : vector<1x64xf32> to vector<16x64xf32>
    %100 = arith.addf %98, %99 : vector<16x64xf32>
    %cst_63 = arith.constant 0.000000e+00 : f32
    %101 = vector.broadcast %cst_63 : f32 to vector<16x64xf32>
    %102 = arith.maximumf %100, %101 : vector<16x64xf32>
    %103 = vector.shape_cast %102 : vector<16x64xf32> to vector<2x8x64xf32>
    %104 = arith.truncf %103 : vector<2x8x64xf32> to vector<2x8x64xbf16>
    %c0_64 = arith.constant 0 : index
    %c1_65 = arith.constant 1 : index
    %c0_66 = arith.constant 0 : index
    %105 = vector.load %arg8[%c0_64, %c1_65, %c0_66] : memref<2x10x64xbf16, #tpu.memory_space<vmem>>, vector<2x8x64xbf16>
    tpu.vector_store %arg8[%c0_64, %c1_65, %c0_66], %104 {strides = array<i32>} : memref<2x10x64xbf16, #tpu.memory_space<vmem>>, vector<2x8x64xbf16>,
    %c0_67 = arith.constant 0 : index
    %c0_68 = arith.constant 0 : index
    %c0_69 = arith.constant 0 : index
    %106 = vector.load %arg8[%c0_67, %c0_68, %c0_69] : memref<2x10x64xbf16, #tpu.memory_space<vmem>>, vector<2x8x64xbf16>
    %107 = vector.shape_cast %106 : vector<2x8x64xbf16> to vector<16x64xbf16>
    %c0_70 = arith.constant 0 : index
    %c0_71 = arith.constant 0 : index
    %c0_72 = arith.constant 0 : index
    %108 = vector.load %arg4[%c0_70, %c0_71, %c0_72] : memref<3x64x64xbf16, #tpu.memory_space<vmem>>, vector<1x64x64xbf16>
    %109 = vector.shape_cast %108 : vector<1x64x64xbf16> to vector<64x64xbf16>
    %cst_73 = arith.constant dense<0.000000e+00> : vector<16x64xf32>
    %110 = tpu.matmul %107, %109, %cst_73 {dimension_numbers = #tpu.dot_dimension_numbers<[1], [0], [0], [1], [0, 0, 1, 1], [], []>} : vector<16x64xbf16>, vector<64x64xbf16>, vector<16x64xf32> -> vector<16x64xf32>
    %c0_74 = arith.constant 0 : index
    %c1_75 = arith.constant 1 : index
    %c0_76 = arith.constant 0 : index
    %111 = vector.load %arg8[%c0_74, %c1_75, %c0_76] : memref<2x10x64xbf16, #tpu.memory_space<vmem>>, vector<2x8x64xbf16>
    %112 = vector.shape_cast %111 : vector<2x8x64xbf16> to vector<16x64xbf16>
    %c1_77 = arith.constant 1 : index
    %c0_78 = arith.constant 0 : index
    %c0_79 = arith.constant 0 : index
    %113 = vector.load %arg4[%c1_77, %c0_78, %c0_79] : memref<3x64x64xbf16, #tpu.memory_space<vmem>>, vector<1x64x64xbf16>
    %114 = vector.shape_cast %113 : vector<1x64x64xbf16> to vector<64x64xbf16>
    %cst_80 = arith.constant dense<0.000000e+00> : vector<16x64xf32>
    %115 = tpu.matmul %112, %114, %cst_80 {dimension_numbers = #tpu.dot_dimension_numbers<[1], [0], [0], [1], [0, 0, 1, 1], [], []>} : vector<16x64xbf16>, vector<64x64xbf16>, vector<16x64xf32> -> vector<16x64xf32>
    %116 = arith.addf %110, %115 : vector<16x64xf32>
    %c0_81 = arith.constant 0 : index
    %c2_82 = arith.constant 2 : index
    %c0_83 = arith.constant 0 : index
    %117 = vector.load %arg8[%c0_81, %c2_82, %c0_83] : memref<2x10x64xbf16, #tpu.memory_space<vmem>>, vector<2x8x64xbf16>
    %118 = vector.shape_cast %117 : vector<2x8x64xbf16> to vector<16x64xbf16>
    %c2_84 = arith.constant 2 : index
    %c0_85 = arith.constant 0 : index
    %c0_86 = arith.constant 0 : index
    %119 = vector.load %arg4[%c2_84, %c0_85, %c0_86] : memref<3x64x64xbf16, #tpu.memory_space<vmem>>, vector<1x64x64xbf16>
    %120 = vector.shape_cast %119 : vector<1x64x64xbf16> to vector<64x64xbf16>
    %cst_87 = arith.constant dense<0.000000e+00> : vector<16x64xf32>
    %121 = tpu.matmul %118, %120, %cst_87 {dimension_numbers = #tpu.dot_dimension_numbers<[1], [0], [0], [1], [0, 0, 1, 1], [], []>} : vector<16x64xbf16>, vector<64x64xbf16>, vector<16x64xf32> -> vector<16x64xf32>
    %122 = arith.addf %116, %121 : vector<16x64xf32>
    %cst_88 = arith.constant dense<0.000000e+00> : vector<64xf32>
    %123 = vector.multi_reduction <add>, %122, %cst_88 [0] : vector<16x64xf32> to vector<64xf32>
    %124 = vector.shape_cast %123 : vector<64xf32> to vector<1x64xf32>
    %cst_89 = arith.constant dense<0.000000e+00> : vector<1x8xf32>
    %125 = tpu.matmul %124, %34, %cst_89 {dimension_numbers = #tpu.dot_dimension_numbers<[1], [0], [0], [1], [0, 0, 1, 1], [], []>} : vector<1x64xf32>, vector<64x8xf32>, vector<1x8xf32> -> vector<1x8xf32>
    %126 = arith.mulf %122, %122 : vector<16x64xf32>
    %cst_90 = arith.constant dense<0.000000e+00> : vector<64xf32>
    %127 = vector.multi_reduction <add>, %126, %cst_90 [0] : vector<16x64xf32> to vector<64xf32>
    %128 = vector.shape_cast %127 : vector<64xf32> to vector<1x64xf32>
    %cst_91 = arith.constant dense<0.000000e+00> : vector<1x8xf32>
    %129 = tpu.matmul %128, %34, %cst_91 {dimension_numbers = #tpu.dot_dimension_numbers<[1], [0], [0], [1], [0, 0, 1, 1], [], []>} : vector<1x64xf32>, vector<64x8xf32>, vector<1x8xf32> -> vector<1x8xf32>
    %cst_92 = arith.constant 7.812500e-03 : f32
    %130 = vector.broadcast %cst_92 : f32 to vector<1x8xf32>
    %131 = arith.mulf %125, %130 : vector<1x8xf32>
    %cst_93 = arith.constant 7.812500e-03 : f32
    %132 = vector.broadcast %cst_93 : f32 to vector<1x8xf32>
    %133 = arith.mulf %129, %132 : vector<1x8xf32>
    %134 = arith.mulf %131, %131 : vector<1x8xf32>
    %135 = arith.subf %133, %134 : vector<1x8xf32>
    %c0_94 = arith.constant 0 : index
    %c0_95 = arith.constant 0 : index
    %136 = vector.load %arg5[%c0_94, %c0_95] : memref<1x8xf32, #tpu.memory_space<vmem>>, vector<1x8xf32>
    %cst_96 = arith.constant 9.99999974E-6 : f32
    %137 = vector.broadcast %cst_96 : f32 to vector<1x8xf32>
    %138 = arith.addf %135, %137 : vector<1x8xf32>
    %139 = math.rsqrt %138 : vector<1x8xf32>
    %140 = arith.mulf %136, %139 : vector<1x8xf32>
    %c0_97 = arith.constant 0 : index
    %c0_98 = arith.constant 0 : index
    %141 = vector.load %arg6[%c0_97, %c0_98] : memref<1x8xf32, #tpu.memory_space<vmem>>, vector<1x8xf32>
    %142 = arith.mulf %131, %140 : vector<1x8xf32>
    %143 = arith.subf %141, %142 : vector<1x8xf32>
    %cst_99 = arith.constant dense<0.000000e+00> : vector<1x64xf32>
    %144 = tpu.matmul %140, %55, %cst_99 {dimension_numbers = #tpu.dot_dimension_numbers<[1], [0], [0], [1], [0, 0, 1, 1], [], []>} : vector<1x8xf32>, vector<8x64xf32>, vector<1x64xf32> -> vector<1x64xf32>
    %cst_100 = arith.constant dense<0.000000e+00> : vector<1x64xf32>
    %145 = tpu.matmul %143, %55, %cst_100 {dimension_numbers = #tpu.dot_dimension_numbers<[1], [0], [0], [1], [0, 0, 1, 1], [], []>} : vector<1x8xf32>, vector<8x64xf32>, vector<1x64xf32> -> vector<1x64xf32>
    %146 = vector.broadcast %144 : vector<1x64xf32> to vector<16x64xf32>
    %147 = arith.mulf %122, %146 : vector<16x64xf32>
    %148 = vector.broadcast %145 : vector<1x64xf32> to vector<16x64xf32>
    %149 = arith.addf %147, %148 : vector<16x64xf32>
    %cst_101 = arith.constant 0.000000e+00 : f32
    %150 = vector.broadcast %cst_101 : f32 to vector<16x64xf32>
    %151 = arith.maximumf %149, %150 : vector<16x64xf32>
    %c0_102 = arith.constant 0 : index
    %c0_103 = arith.constant 0 : index
    %152 = vector.load %arg7[%c0_102, %c0_103] : memref<16x64xf32, #tpu.memory_space<vmem>>, vector<16x64xf32>
    tpu.vector_store %arg7[%c0_102, %c0_103], %151 {strides = array<i32>} : memref<16x64xf32, #tpu.memory_space<vmem>>, vector<16x64xf32>,
    return
  }
}

</mosaic_0001>

<llo_original>
// kernel: down_forward.1
$region0: #{down_forward.1}
  #allocation0 [shape = 'u32[]', space=smem, size = 0x4, offset = 0x4, fixed_abs, tag = 'smem constant byte address 0x4 - core index']
  #allocation1 [shape = 'u32[144,128]{1,0:T(1,128)}', space=vmem, size = 0x12000, scoped, tag = 'internal scratch']
  #allocation2 [shape = 'bf16[2,10,64]{2,1,0:T(8,128)(2,1)}', space=vmem, size = 0x2000, scoped, tag = 'scratch operand']
  %s0 = inlined_call_operand.vmem [shape: bf16[4,2,8,32], index: 0, kind: input, shape index: {}]
  %s1 = inlined_call_operand.vmem [shape: bf16[3,32,64], index: 1, kind: input, shape index: {}]
  %s2 = inlined_call_operand.vmem [shape: f32[1,8], index: 2, kind: input, shape index: {}]
  %s3 = inlined_call_operand.vmem [shape: f32[1,8], index: 3, kind: input, shape index: {}]
  %s4 = inlined_call_operand.vmem [shape: bf16[3,64,64], index: 4, kind: input, shape index: {}]
  %s5 = inlined_call_operand.vmem [shape: f32[1,8], index: 5, kind: input, shape index: {}]
  %s6 = inlined_call_operand.vmem [shape: f32[1,8], index: 6, kind: input, shape index: {}]
  %s7 = inlined_call_operand.vmem [shape: f32[16,64], index: 7, kind: output, shape index: {}]
  %s8 = sld [smem:[#allocation0]]
  $region38: #{down_forward.1} parent=0
    _
  %s10 = ssub.s32 1, %s8
  %s11 = scalar_select 0, %s10, %s8
  // Predicated region
  $region2: #{down_forward.1} parent=0 // pred_check
    _
  $region3: #{down_forward.1} parent=0 // pred_check_branch
    %13 = sbr.rel (0) target = $region5
  $region4: #{down_forward.1} parent=0 // pred_region
    _
  $region5: #{down_forward.1} parent=0 // pred_fallthru
    _
  // Predicated region
  $region6: #{down_forward.1} parent=0 // pred_check
    _
  $region7: #{down_forward.1} parent=0 // pred_check_branch
    %15 = sbr.rel (0) target = $region9
  $region8: #{down_forward.1} parent=0 // pred_region
    _
  $region9: #{down_forward.1} parent=0 // pred_fallthru
    _
  // Predicated region
  $region10: #{down_forward.1} parent=0 // pred_check
    _
  $region11: #{down_forward.1} parent=0 // pred_check_branch
    %17 = sbr.rel (0) target = $region13
  $region12: #{down_forward.1} parent=0 // pred_region
    _
  $region13: #{down_forward.1} parent=0 // pred_fallthru
    _
  // Predicated region
  $region14: #{down_forward.1} parent=0 // pred_check
    _
  $region15: #{down_forward.1} parent=0 // pred_check_branch
    %19 = sbr.rel (0) target = $region17
  $region16: #{down_forward.1} parent=0 // pred_region
    _
  $region17: #{down_forward.1} parent=0 // pred_fallthru
    _
  // Predicated region
  $region18: #{down_forward.1} parent=0 // pred_check
    _
  $region19: #{down_forward.1} parent=0 // pred_check_branch
    %21 = sbr.rel (0) target = $region21
  $region20: #{down_forward.1} parent=0 // pred_region
    _
  $region21: #{down_forward.1} parent=0 // pred_fallthru
    _
  // Predicated region
  $region22: #{down_forward.1} parent=0 // pred_check
    _
  $region23: #{down_forward.1} parent=0 // pred_check_branch
    %23 = sbr.rel (0) target = $region25
  $region24: #{down_forward.1} parent=0 // pred_region
    _
  $region25: #{down_forward.1} parent=0 // pred_fallthru
    _
  // Predicated region
  $region26: #{down_forward.1} parent=0 // pred_check
    _
  $region27: #{down_forward.1} parent=0 // pred_check_branch
    %25 = sbr.rel (0) target = $region29
  $region28: #{down_forward.1} parent=0 // pred_region
    _
  $region29: #{down_forward.1} parent=0 // pred_fallthru
    _
  %v27 = vld [vmem:[%s0] sm:$0xf]
  %v28 = vld [vmem:[%s0 + $0x4] sm:$0xf]
  %s29 = scalar_lea.vmem %s0, 8
  %v30 = vld [vmem:[%s29] sm:$0xf]
  %v31 = vld [vmem:[%s29 + $0x4] sm:$0xf]
  %v32 = vmax.bf16 %v27, %v30
  %v33 = vmax.bf16 %v28, %v31
  %s34 = scalar_lea.vmem %s0, 16
  %v35 = vld [vmem:[%s34] sm:$0xf]
  %v36 = vld [vmem:[%s34 + $0x4] sm:$0xf]
  %s37 = scalar_lea.vmem %s0, 24
  %v38 = vld [vmem:[%s37] sm:$0xf]
  %v39 = vld [vmem:[%s37 + $0x4] sm:$0xf]
  %v40 = vmax.bf16 %v35, %v38
  %v41 = vmax.bf16 %v36, %v39
  %v42 = vmax.bf16 %v32, %v40
  %v43 = vmax.bf16 %v33, %v41
  %vm44 = vcmask 516096
  %vm45 = vsmask.f32 256
  %vm46 = vmand %vm44, %vm45
  %v47 = vld [vmem:[#allocation2] sm:$0x1]
  %v48 = vsel %vm46, 0, %v47
  %49 = vst [vmem:[#allocation2] sm:$0x1] %v48
  %v50 = vld [vmem:[#allocation2 + $0x8] sm:$0x1]
  %v51 = vsel %vm46, 0, %v50
  %52 = vst [vmem:[#allocation2 + $0x8] sm:$0x1] %v51
  %vm53 = vsmask.f32 7938
  %vm54 = vmand %vm44, %vm53
  %v55 = vld [vmem:[#allocation2 + $0x4] sm:$0x1]
  %v56 = vsel %vm54, 0, %v55
  %57 = vst [vmem:[#allocation2 + $0x4] sm:$0x1] %v56
  %v58 = vld [vmem:[#allocation2 + $0xc] sm:$0x1]
  %v59 = vsel %vm54, 0, %v58
  %60 = vst [vmem:[#allocation2 + $0xc] sm:$0x1] %v59
  %v61 = vlaneseq
  %v62 = vshrl.u32 %v61, 7
  %v63 = vadd.s32 %v62, 8
  %v64 = vadd.s32 %v62, 16
  %v65 = vadd.s32 %v62, 24
  %v66 = vadd.s32 %v62, 32
  %v67 = vadd.s32 %v62, 40
  %v68 = vadd.s32 %v62, 48
  %v69 = vadd.s32 %v62, 56
  %v70 = vlaneseq
  %v71 = vand.u32 %v70, 127
  %vm72 = vcmp.lt.s32.totalorder %v62, 0
  %v73 = vsub.s32 0, %v62
  %v74 = vsel %vm72, %v73, %v62
  %v75 = vshrl.u32 %v74, 3
  %v76 = vand.u32 %v74, 7
  %v77 = vsub.s32 0, %v76
  %v78 = vsel %vm72, %v77, %v76
  %vm79 = vcmp.lt.s32.totalorder %v63, 0
  %v80 = vsub.s32 0, %v63
  %v81 = vsel %vm79, %v80, %v63
  %v82 = vshrl.u32 %v81, 3
  %v83 = vand.u32 %v81, 7
  %v84 = vsub.s32 0, %v83
  %v85 = vsel %vm79, %v84, %v83
  %vm86 = vcmp.lt.s32.totalorder %v64, 0
  %v87 = vsub.s32 0, %v64
  %v88 = vsel %vm86, %v87, %v64
  %v89 = vshrl.u32 %v88, 3
  %v90 = vand.u32 %v88, 7
  %v91 = vsub.s32 0, %v90
  %v92 = vsel %vm86, %v91, %v90
  %vm93 = vcmp.lt.s32.totalorder %v65, 0
  %v94 = vsub.s32 0, %v65
  %v95 = vsel %vm93, %v94, %v65
  %v96 = vshrl.u32 %v95, 3
  %v97 = vand.u32 %v95, 7
  %v98 = vsub.s32 0, %v97
  %v99 = vsel %vm93, %v98, %v97
  %vm100 = vcmp.lt.s32.totalorder %v66, 0
  %v101 = vsub.s32 0, %v66
  %v102 = vsel %vm100, %v101, %v66
  %v103 = vshrl.u32 %v102, 3
  %v104 = vand.u32 %v102, 7
  %v105 = vsub.s32 0, %v104
  %v106 = vsel %vm100, %v105, %v104
  %vm107 = vcmp.lt.s32.totalorder %v67, 0
  %v108 = vsub.s32 0, %v67
  %v109 = vsel %vm107, %v108, %v67
  %v110 = vshrl.u32 %v109, 3
  %v111 = vand.u32 %v109, 7
  %v112 = vsub.s32 0, %v111
  %v113 = vsel %vm107, %v112, %v111
  %vm114 = vcmp.lt.s32.totalorder %v68, 0
  %v115 = vsub.s32 0, %v68
  %v116 = vsel %vm114, %v115, %v68
  %v117 = vshrl.u32 %v116, 3
  %v118 = vand.u32 %v116, 7
  %v119 = vsub.s32 0, %v118
  %v120 = vsel %vm114, %v119, %v118
  %vm121 = vcmp.lt.s32.totalorder %v69, 0
  %v122 = vsub.s32 0, %v69
  %v123 = vsel %vm121, %v122, %v69
  %v124 = vshrl.u32 %v123, 3
  %v125 = vand.u32 %v123, 7
  %v126 = vsub.s32 0, %v125
  %v127 = vsel %vm121, %v126, %v125
  %vm128 = vcmp.ne.s32.totalorder %v78, 0
  %vm129 = vcmp.ne.s32.totalorder %v85, 0
  %vm130 = vcmp.ne.s32.totalorder %v92, 0
  %vm131 = vcmp.ne.s32.totalorder %v99, 0
  %vm132 = vcmp.ne.s32.totalorder %v106, 0
  %vm133 = vcmp.ne.s32.totalorder %v113, 0
  %vm134 = vcmp.ne.s32.totalorder %v120, 0
  %vm135 = vcmp.ne.s32.totalorder %v127, 0
  %vm136 = vcmp.lt.s32.totalorder %v78, 0
  %vm137 = vcmp.lt.s32.totalorder %v85, 0
  %vm138 = vcmp.lt.s32.totalorder %v92, 0
  %vm139 = vcmp.lt.s32.totalorder %v99, 0
  %vm140 = vcmp.lt.s32.totalorder %v106, 0
  %vm141 = vcmp.lt.s32.totalorder %v113, 0
  %vm142 = vcmp.lt.s32.totalorder %v120, 0
  %vm143 = vcmp.lt.s32.totalorder %v127, 0
  %vm144 = vmand %vm136, %vm128
  %vm145 = vmand %vm137, %vm129
  %vm146 = vmand %vm138, %vm130
  %vm147 = vmand %vm139, %vm131
  %vm148 = vmand %vm140, %vm132
  %vm149 = vmand %vm141, %vm133
  %vm150 = vmand %vm142, %vm134
  %vm151 = vmand %vm143, %vm135
  %v152 = vadd.s32 %v78, 8
  %v153 = vadd.s32 %v85, 8
  %v154 = vadd.s32 %v92, 8
  %v155 = vadd.s32 %v99, 8
  %v156 = vadd.s32 %v106, 8
  %v157 = vadd.s32 %v113, 8
  %v158 = vadd.s32 %v120, 8
  %v159 = vadd.s32 %v127, 8
  %v160 = vsel %vm144, %v152, %v78
  %v161 = vsel %vm145, %v153, %v85
  %v162 = vsel %vm146, %v154, %v92
  %v163 = vsel %vm147, %v155, %v99
  %v164 = vsel %vm148, %v156, %v106
  %v165 = vsel %vm149, %v157, %v113
  %v166 = vsel %vm150, %v158, %v120
  %v167 = vsel %vm151, %v159, %v127
  %vm168 = vcmp.eq.s32.totalorder %v160, %v71
  %vm169 = vcmp.eq.s32.totalorder %v161, %v71
  %vm170 = vcmp.eq.s32.totalorder %v162, %v71
  %vm171 = vcmp.eq.s32.totalorder %v163, %v71
  %vm172 = vcmp.eq.s32.totalorder %v164, %v71
  %vm173 = vcmp.eq.s32.totalorder %v165, %v71
  %vm174 = vcmp.eq.s32.totalorder %v166, %v71
  %vm175 = vcmp.eq.s32.totalorder %v167, %v71
  %v176 = vsel %vm168, 1, 0
  %v177 = vsel %vm169, 1, 0
  %v178 = vsel %vm170, 1, 0
  %v179 = vsel %vm171, 1, 0
  %v180 = vsel %vm172, 1, 0
  %v181 = vsel %vm173, 1, 0
  %v182 = vsel %vm174, 1, 0
  %v183 = vsel %vm175, 1, 0
  %v184 = vcvt.s32.f32 %v176
  %v185 = vcvt.s32.f32 %v177
  %v186 = vcvt.s32.f32 %v178
  %v187 = vcvt.s32.f32 %v179
  %v188 = vcvt.s32.f32 %v180
  %v189 = vcvt.s32.f32 %v181
  %v190 = vcvt.s32.f32 %v182
  %v191 = vcvt.s32.f32 %v183
  %vm192 = vcmp.lt.s32.totalorder %v71, 0
  %v193 = vsub.s32 0, %v71
  %v194 = vsel %vm192, %v193, %v71
  %v195 = vshrl.u32 %v194, 3
  %v196 = vand.u32 %v194, 7
  %v197 = vsub.s32 0, %v196
  %v198 = vsel %vm192, %v197, %v196
  %vm199 = vcmp.ne.s32.totalorder %v198, 0
  %vm200 = vcmp.lt.s32.totalorder %v198, 0
  %vm201 = vmand %vm200, %vm199
  %v202 = vadd.s32 %v198, 8
  %v203 = vsel %vm201, %v202, %v198
  %vm204 = vcmp.eq.s32.totalorder %v203, %v62
  %v205 = vsel %vm204, 1, 0
  %v206 = vcvt.s32.f32 %v205
  %v208 = vshrl.u32 %v42, 16
  %v210 = vrot.slane %v208, 7
  %v211 = vshll.u32 %v42, 16
  %v213 = vor.u32 %v210, %v211
  %v214 = vrot.slane %v210, 4
  %v216 = vshrl.u32 %v43, 16
  %v218 = vrot.slane %v216, 7
  %v219 = vshll.u32 %v43, 16
  %v221 = vor.u32 %v218, %v219
  %v222 = vrot.slane %v218, 4
  %vm227 = vcmask 257024
  %vm228 = vmand %vm227, %vm53
  %v229 = vld [vmem:[#allocation2] sm:$0xf]
  %v230 = vsel %vm228, %v213, %v229
  %231 = vst [vmem:[#allocation2] sm:$0xf] %v230
  %vm232 = vcmask 253952
  %vm233 = vmand %vm232, %vm45
  %v234 = vld [vmem:[#allocation2 + $0x4] sm:$0x1]
  %v235 = vsel %vm233, %v214, %v234
  %236 = vst [vmem:[#allocation2 + $0x4] sm:$0x1] %v235
  %v237 = vld [vmem:[#allocation2 + $0x8] sm:$0xf]
  %v238 = vsel %vm228, %v221, %v237
  %239 = vst [vmem:[#allocation2 + $0x8] sm:$0xf] %v238
  %v240 = vld [vmem:[#allocation2 + $0xc] sm:$0x1]
  %v241 = vsel %vm233, %v222, %v240
  %242 = vst [vmem:[#allocation2 + $0xc] sm:$0x1] %v241
  %v243 = vld [vmem:[#allocation2] sm:$0xf]
  %v244 = vld [vmem:[#allocation2 + $0x8] sm:$0xf]
  %v245 = vld [vmem:[%s1] sm:$0xf]
  %v246 = vld [vmem:[%s1 + $0x4] sm:$0xf]
  %v247 = vld [vmem:[%s1 + $0x8] sm:$0xf]
  %v248 = vld [vmem:[%s1 + $0xc] sm:$0xf]
  %v249 = vld [vmem:[#allocation2 + $0x4] sm:$0x1]
  %v250 = vld [vmem:[#allocation2 + $0xc] sm:$0x1]
  %vm251 = vsmask.f32 3328
  %vm252 = vsmask.f32 7440
  %vm253 = vmor %vm251, %vm252
  %v255 = vshrl.u32 %v243, 16
  %v257 = vrot.slane %v255, 4
  %v258 = vshll.u32 %v243, 16
  %v260 = vrot.slane %v258, 5
  %v261 = vor.u32 %v257, %v260
  %v262 = vrot.slane %v261, 4
  %v264 = vshll.u32 %v249, 16
  %v266 = vrot.slane %v264, 5
  %v267 = vsel %vm253, %v262, %v266
  %v269 = vshrl.u32 %v244, 16
  %v271 = vrot.slane %v269, 4
  %v272 = vshll.u32 %v244, 16
  %v274 = vrot.slane %v272, 5
  %v275 = vor.u32 %v271, %v274
  %v276 = vrot.slane %v275, 4
  %v278 = vshll.u32 %v250, 16
  %v280 = vrot.slane %v278, 5
  %v281 = vsel %vm253, %v276, %v280
  %s282 = scalar_lea.vmem %s1, 16
  %v283 = vld [vmem:[%s282] sm:$0xf]
  %v284 = vld [vmem:[%s282 + $0x4] sm:$0xf]
  %v285 = vld [vmem:[%s282 + $0x8] sm:$0xf]
  %v286 = vld [vmem:[%s282 + $0xc] sm:$0xf]
  %v287 = vunpack.c.l.b16 %v267
  %v288 = vunpack.c.l.b16 %v281
  %v289 = vpack.c.b16 %v288, %v287
  %v294 = vunpack.c.l.b16 %v283
  %v295 = vunpack.c.l.b16 %v284
  %v296 = vunpack.c.l.b16 %v285
  %v297 = vunpack.c.l.b16 %v286
  %v298 = vpack.c.b16 %v295, %v294
  %v299 = vpack.c.b16 %v297, %v296
  %vm302 = vcmask 261120
  %v304 = vsel %vm302, %v289, 0
  %306 = vmatprep.subr.bf16.mxu0 0
  %307 = vmatpush1.bf16.msra.mxu0 0
  %308 = vmatprep.subr.bf16.mxu0 0
  %309 = vmatpush1.bf16.msra.mxu0 0
  %310 = vmatprep.subr.bf16.mxu0 0
  %311 = vmatpush1.bf16.msra.mxu0 0
  %312 = vmatprep.subr.bf16.mxu0 0
  %313 = vmatpush1.bf16.msra.mxu0 0
  %314 = vmatprep.subr.bf16.mxu0 0
  %315 = vmatpush1.bf16.msra.mxu0 0
  %316 = vmatprep.subr.bf16.mxu0 0
  %317 = vmatpush1.bf16.msra.mxu0 0
  %318 = vmatprep.subr.bf16.mxu0 0
  %319 = vmatpush1.bf16.msra.mxu0 %v299
  %320 = vmatprep.subr.bf16.mxu0 0
  %321 = vmatpush1.bf16.msra.mxu0 %v298
  %322 = vmatprep.subr.bf16.mxu0 0
  %323 = vmatpush2.bf16.msra.mxu0 0
  %324 = vmatprep.subr.bf16.mxu0 0
  %325 = vmatpush2.bf16.msra.mxu0 0
  %326 = vmatprep.subr.bf16.mxu0 0
  %327 = vmatpush2.bf16.msra.mxu0 0
  %328 = vmatprep.subr.bf16.mxu0 0
  %329 = vmatpush2.bf16.msra.mxu0 0
  %330 = vmatprep.subr.bf16.mxu0 0
  %331 = vmatpush2.bf16.msra.mxu0 0
  %332 = vmatprep.subr.bf16.mxu0 0
  %333 = vmatpush2.bf16.msra.mxu0 0
  %334 = vmatprep.subr.bf16.mxu0 0
  %335 = vmatpush2.bf16.msra.mxu0 0
  %336 = vmatprep.subr.bf16.mxu0 0
  %337 = vmatpush2.bf16.msra.mxu0 0
  %338 = vmatprep.mubr.bf16.mxu0 0
  %339 = vmatmul.mubr.bf16.gmra.mxu0 %v304
  %v340 = vpop.f32.mrf.mxu0
  %v341 = vadd.f32 0.0, %v340
  %v342 = vpop.f32.mrf.mxu0
  %v343 = vpop.f32.mrf.mxu0
  %v344 = vadd.f32 0.0, %v343
  %v345 = vpop.f32.mrf.mxu0
  %346 = vdwg.mxu0
  %v349 = vunpack.c.l.b16 %v243
  %v350 = vunpack.c.l.b16 %v244
  %v351 = vpack.c.b16 %v350, %v349
  %v356 = vunpack.c.l.b16 %v245
  %v357 = vunpack.c.l.b16 %v246
  %v358 = vunpack.c.l.b16 %v247
  %v359 = vunpack.c.l.b16 %v248
  %v360 = vpack.c.b16 %v357, %v356
  %v361 = vpack.c.b16 %v359, %v358
  %v365 = vsel %vm302, %v351, 0
  %367 = vmatprep.subr.bf16.mxu0 0
  %368 = vmatpush1.bf16.msra.mxu0 0
  %369 = vmatprep.subr.bf16.mxu0 0
  %370 = vmatpush1.bf16.msra.mxu0 0
  %371 = vmatprep.subr.bf16.mxu0 0
  %372 = vmatpush1.bf16.msra.mxu0 0
  %373 = vmatprep.subr.bf16.mxu0 0
  %374 = vmatpush1.bf16.msra.mxu0 0
  %375 = vmatprep.subr.bf16.mxu0 0
  %376 = vmatpush1.bf16.msra.mxu0 0
  %377 = vmatprep.subr.bf16.mxu0 0
  %378 = vmatpush1.bf16.msra.mxu0 0
  %379 = vmatprep.subr.bf16.mxu0 0
  %380 = vmatpush1.bf16.msra.mxu0 %v361
  %381 = vmatprep.subr.bf16.mxu0 0
  %382 = vmatpush1.bf16.msra.mxu0 %v360
  %383 = vmatprep.subr.bf16.mxu0 0
  %384 = vmatpush2.bf16.msra.mxu0 0
  %385 = vmatprep.subr.bf16.mxu0 0
  %386 = vmatpush2.bf16.msra.mxu0 0
  %387 = vmatprep.subr.bf16.mxu0 0
  %388 = vmatpush2.bf16.msra.mxu0 0
  %389 = vmatprep.subr.bf16.mxu0 0
  %390 = vmatpush2.bf16.msra.mxu0 0
  %391 = vmatprep.subr.bf16.mxu0 0
  %392 = vmatpush2.bf16.msra.mxu0 0
  %393 = vmatprep.subr.bf16.mxu0 0
  %394 = vmatpush2.bf16.msra.mxu0 0
  %395 = vmatprep.subr.bf16.mxu0 0
  %396 = vmatpush2.bf16.msra.mxu0 0
  %397 = vmatprep.subr.bf16.mxu0 0
  %398 = vmatpush2.bf16.msra.mxu0 0
  %399 = vmatprep.mubr.bf16.mxu0 0
  %400 = vmatmul.mubr.bf16.gmra.mxu0 %v365
  %v401 = vpop.f32.mrf.mxu0
  %v402 = vadd.f32 %v341, %v401
  %v403 = vpop.f32.mrf.mxu0
  %v404 = vpop.f32.mrf.mxu0
  %v405 = vadd.f32 %v344, %v404
  %v406 = vpop.f32.mrf.mxu0
  %407 = vdwg.mxu0
  %v408 = vld [vmem:[#allocation2] sm:$0xe]
  %v409 = vld [vmem:[#allocation2 + $0x8] sm:$0xe]
  %vm414 = vcmask 1042432
  %vm415 = vcmask 1046532
  %vm416 = vmor %vm414, %vm415
  %v417 = vrot.slane %v408, 5
  %v418 = vrot.slane %v417, 4
  %v419 = vrot.slane %v249, 5
  %v420 = vsel %vm416, %v418, %v419
  %v421 = vrot.slane %v409, 5
  %v422 = vrot.slane %v421, 4
  %v423 = vrot.slane %v250, 5
  %v424 = vsel %vm416, %v422, %v423
  %s425 = scalar_lea.vmem %s1, 32
  %v426 = vld [vmem:[%s425] sm:$0xf]
  %v427 = vld [vmem:[%s425 + $0x4] sm:$0xf]
  %v428 = vld [vmem:[%s425 + $0x8] sm:$0xf]
  %v429 = vld [vmem:[%s425 + $0xc] sm:$0xf]
  %v430 = vunpack.c.l.b16 %v420
  %v431 = vunpack.c.l.b16 %v424
  %v432 = vpack.c.b16 %v431, %v430
  %v437 = vunpack.c.l.b16 %v426
  %v438 = vunpack.c.l.b16 %v427
  %v439 = vunpack.c.l.b16 %v428
  %v440 = vunpack.c.l.b16 %v429
  %v441 = vpack.c.b16 %v438, %v437
  %v442 = vpack.c.b16 %v440, %v439
  %v446 = vsel %vm302, %v432, 0
  %448 = vmatprep.subr.bf16.mxu0 0
  %449 = vmatpush1.bf16.msra.mxu0 0
  %450 = vmatprep.subr.bf16.mxu0 0
  %451 = vmatpush1.bf16.msra.mxu0 0
  %452 = vmatprep.subr.bf16.mxu0 0
  %453 = vmatpush1.bf16.msra.mxu0 0
  %454 = vmatprep.subr.bf16.mxu0 0
  %455 = vmatpush1.bf16.msra.mxu0 0
  %456 = vmatprep.subr.bf16.mxu0 0
  %457 = vmatpush1.bf16.msra.mxu0 0
  %458 = vmatprep.subr.bf16.mxu0 0
  %459 = vmatpush1.bf16.msra.mxu0 0
  %460 = vmatprep.subr.bf16.mxu0 0
  %461 = vmatpush1.bf16.msra.mxu0 %v442
  %462 = vmatprep.subr.bf16.mxu0 0
  %463 = vmatpush1.bf16.msra.mxu0 %v441
  %464 = vmatprep.subr.bf16.mxu0 0
  %465 = vmatpush2.bf16.msra.mxu0 0
  %466 = vmatprep.subr.bf16.mxu0 0
  %467 = vmatpush2.bf16.msra.mxu0 0
  %468 = vmatprep.subr.bf16.mxu0 0
  %469 = vmatpush2.bf16.msra.mxu0 0
  %470 = vmatprep.subr.bf16.mxu0 0
  %471 = vmatpush2.bf16.msra.mxu0 0
  %472 = vmatprep.subr.bf16.mxu0 0
  %473 = vmatpush2.bf16.msra.mxu0 0
  %474 = vmatprep.subr.bf16.mxu0 0
  %475 = vmatpush2.bf16.msra.mxu0 0
  %476 = vmatprep.subr.bf16.mxu0 0
  %477 = vmatpush2.bf16.msra.mxu0 0
  %478 = vmatprep.subr.bf16.mxu0 0
  %479 = vmatpush2.bf16.msra.mxu0 0
  %480 = vmatprep.mubr.bf16.mxu0 0
  %481 = vmatmul.mubr.bf16.gmra.mxu0 %v446
  %v482 = vpop.f32.mrf.mxu0
  %v483 = vadd.f32 0.0, %v482
  %v484 = vpop.f32.mrf.mxu0
  %v485 = vpop.f32.mrf.mxu0
  %v486 = vadd.f32 0.0, %v485
  %v487 = vpop.f32.mrf.mxu0
  %488 = vdwg.mxu0
  %v489 = vadd.f32 %v402, %v483
  %v490 = vadd.f32 %v405, %v486
  %vm491 = vcmask 523264
  %v492 = vsel %vm491, %v489, 0.0
  %v493 = vsel %vm491, %v490, 0.0
  %v494 = vadd.f32 %v492, %v493
  %v495 = vrot.slane %v494, 4
  %v496 = vadd.f32 %v494, %v495
  %v497 = vrot.slane %v496, 2
  %v498 = vadd.f32 %v496, %v497
  %v499 = vrot.slane %v498, 1
  %v500 = vadd.f32 %v498, %v499
  %v502 = vsel %vm491, %v500, 0
  %504 = vmatprep.subr.mxu0 0.0
  %505 = vmatpush1.msra.mxu0 0.0
  %506 = vmatprep.subr.mxu0 0.0
  %507 = vmatpush1.msra.mxu0 0.0
  %508 = vmatprep.subr.mxu0 0.0
  %509 = vmatpush1.msra.mxu0 0.0
  %510 = vmatprep.subr.mxu0 0.0
  %511 = vmatpush1.msra.mxu0 0.0
  %512 = vmatprep.subr.mxu0 0.0
  %513 = vmatpush1.msra.mxu0 0.0
  %514 = vmatprep.subr.mxu0 0.0
  %515 = vmatpush1.msra.mxu0 0.0
  %516 = vmatprep.subr.mxu0 0.0
  %517 = vmatpush1.msra.mxu0 0.0
  %518 = vmatprep.subr.mxu0 0.0
  %519 = vmatpush1.msra.mxu0 0.0
  %520 = vmatprep.subr.mxu0 0.0
  %521 = vmatpush1.msra.mxu0 %v191
  %522 = vmatprep.subr.mxu0 0.0
  %523 = vmatpush1.msra.mxu0 %v190
  %524 = vmatprep.subr.mxu0 0.0
  %525 = vmatpush1.msra.mxu0 %v189
  %526 = vmatprep.subr.mxu0 0.0
  %527 = vmatpush1.msra.mxu0 %v188
  %528 = vmatprep.subr.mxu0 0.0
  %529 = vmatpush1.msra.mxu0 %v187
  %530 = vmatprep.subr.mxu0 0.0
  %531 = vmatpush1.msra.mxu0 %v186
  %532 = vmatprep.subr.mxu0 0.0
  %533 = vmatpush1.msra.mxu0 %v185
  %534 = vmatprep.subr.mxu0 0.0
  %535 = vmatpush1.msra.mxu0 %v184
  %536 = vmatprep.subr.mxu0 0.0
  %537 = vmatpush2.msra.mxu0 0.0
  %538 = vmatprep.subr.mxu0 0.0
  %539 = vmatpush2.msra.mxu0 0.0
  %540 = vmatprep.subr.mxu0 0.0
  %541 = vmatpush2.msra.mxu0 0.0
  %542 = vmatprep.subr.mxu0 0.0
  %543 = vmatpush2.msra.mxu0 0.0
  %544 = vmatprep.subr.mxu0 0.0
  %545 = vmatpush2.msra.mxu0 0.0
  %546 = vmatprep.subr.mxu0 0.0
  %547 = vmatpush2.msra.mxu0 0.0
  %548 = vmatprep.subr.mxu0 0.0
  %549 = vmatpush2.msra.mxu0 0.0
  %550 = vmatprep.subr.mxu0 0.0
  %551 = vmatpush2.msra.mxu0 0.0
  %552 = vmatprep.subr.mxu0 0.0
  %553 = vmatpush2.msra.mxu0 0.0
  %554 = vmatprep.subr.mxu0 0.0
  %555 = vmatpush2.msra.mxu0 0.0
  %556 = vmatprep.subr.mxu0 0.0
  %557 = vmatpush2.msra.mxu0 0.0
  %558 = vmatprep.subr.mxu0 0.0
  %559 = vmatpush2.msra.mxu0 0.0
  %560 = vmatprep.subr.mxu0 0.0
  %561 = vmatpush2.msra.mxu0 0.0
  %562 = vmatprep.subr.mxu0 0.0
  %563 = vmatpush2.msra.mxu0 0.0
  %564 = vmatprep.subr.mxu0 0.0
  %565 = vmatpush2.msra.mxu0 0.0
  %566 = vmatprep.subr.mxu0 0.0
  %567 = vmatpush2.msra.mxu0 0.0
  %568 = vmatprep.mubr.f32.mxu0 0.0
  %569 = vmatmul.mubr.f32.gmra.mxu0 %v502
  %v570 = vpop.f32.mrf.mxu0
  %v571 = vadd.f32 0.0, %v570
  %v572 = vpop.f32.mrf.mxu0
  %573 = vdwg.mxu0
  %v574 = vmul.f32 %v489, %v489
  %v575 = vmul.f32 %v490, %v490
  %v576 = vsel %vm491, %v574, 0.0
  %v577 = vsel %vm491, %v575, 0.0
  %v578 = vadd.f32 %v576, %v577
  %v579 = vrot.slane %v578, 4
  %v580 = vadd.f32 %v578, %v579
  %v581 = vrot.slane %v580, 2
  %v582 = vadd.f32 %v580, %v581
  %v583 = vrot.slane %v582, 1
  %v584 = vadd.f32 %v582, %v583
  %v586 = vsel %vm491, %v584, 0
  %588 = vmatprep.subr.mxu0 0.0
  %589 = vmatpush1.msra.mxu0 0.0
  %590 = vmatprep.subr.mxu0 0.0
  %591 = vmatpush1.msra.mxu0 0.0
  %592 = vmatprep.subr.mxu0 0.0
  %593 = vmatpush1.msra.mxu0 0.0
  %594 = vmatprep.subr.mxu0 0.0
  %595 = vmatpush1.msra.mxu0 0.0
  %596 = vmatprep.subr.mxu0 0.0
  %597 = vmatpush1.msra.mxu0 0.0
  %598 = vmatprep.subr.mxu0 0.0
  %599 = vmatpush1.msra.mxu0 0.0
  %600 = vmatprep.subr.mxu0 0.0
  %601 = vmatpush1.msra.mxu0 0.0
  %602 = vmatprep.subr.mxu0 0.0
  %603 = vmatpush1.msra.mxu0 0.0
  %604 = vmatprep.subr.mxu0 0.0
  %605 = vmatpush1.msra.mxu0 %v191
  %606 = vmatprep.subr.mxu0 0.0
  %607 = vmatpush1.msra.mxu0 %v190
  %608 = vmatprep.subr.mxu0 0.0
  %609 = vmatpush1.msra.mxu0 %v189
  %610 = vmatprep.subr.mxu0 0.0
  %611 = vmatpush1.msra.mxu0 %v188
  %612 = vmatprep.subr.mxu0 0.0
  %613 = vmatpush1.msra.mxu0 %v187
  %614 = vmatprep.subr.mxu0 0.0
  %615 = vmatpush1.msra.mxu0 %v186
  %616 = vmatprep.subr.mxu0 0.0
  %617 = vmatpush1.msra.mxu0 %v185
  %618 = vmatprep.subr.mxu0 0.0
  %619 = vmatpush1.msra.mxu0 %v184
  %620 = vmatprep.subr.mxu0 0.0
  %621 = vmatpush2.msra.mxu0 0.0
  %622 = vmatprep.subr.mxu0 0.0
  %623 = vmatpush2.msra.mxu0 0.0
  %624 = vmatprep.subr.mxu0 0.0
  %625 = vmatpush2.msra.mxu0 0.0
  %626 = vmatprep.subr.mxu0 0.0
  %627 = vmatpush2.msra.mxu0 0.0
  %628 = vmatprep.subr.mxu0 0.0
  %629 = vmatpush2.msra.mxu0 0.0
  %630 = vmatprep.subr.mxu0 0.0
  %631 = vmatpush2.msra.mxu0 0.0
  %632 = vmatprep.subr.mxu0 0.0
  %633 = vmatpush2.msra.mxu0 0.0
  %634 = vmatprep.subr.mxu0 0.0
  %635 = vmatpush2.msra.mxu0 0.0
  %636 = vmatprep.subr.mxu0 0.0
  %637 = vmatpush2.msra.mxu0 0.0
  %638 = vmatprep.subr.mxu0 0.0
  %639 = vmatpush2.msra.mxu0 0.0
  %640 = vmatprep.subr.mxu0 0.0
  %641 = vmatpush2.msra.mxu0 0.0
  %642 = vmatprep.subr.mxu0 0.0
  %643 = vmatpush2.msra.mxu0 0.0
  %644 = vmatprep.subr.mxu0 0.0
  %645 = vmatpush2.msra.mxu0 0.0
  %646 = vmatprep.subr.mxu0 0.0
  %647 = vmatpush2.msra.mxu0 0.0
  %648 = vmatprep.subr.mxu0 0.0
  %649 = vmatpush2.msra.mxu0 0.0
  %650 = vmatprep.subr.mxu0 0.0
  %651 = vmatpush2.msra.mxu0 0.0
  %652 = vmatprep.mubr.f32.mxu0 0.0
  %653 = vmatmul.mubr.f32.gmra.mxu0 %v586
  %v654 = vpop.f32.mrf.mxu0
  %v655 = vadd.f32 0.0, %v654
  %v656 = vpop.f32.mrf.mxu0
  %657 = vdwg.mxu0
  %v658 = vmul.f32 %v571, 0.0078125
  %v659 = vmul.f32 %v655, 0.0078125
  %v660 = vmul.f32 %v658, %v658
  %v661 = vsub.f32 %v659, %v660
  %v662 = vld [vmem:[%s2] sm:$0x1]
  %v663 = vadd.f32 %v661, 1e-05
  %v664 = vrsqrt.pop %v663
  %v665 = vmul.f32 %v662, %v664
  %v666 = vld [vmem:[%s3] sm:$0x1]
  %v667 = vmul.f32 %v658, %v665
  %v668 = vsub.f32 %v666, %v667
  %vm669 = vcmask 64512
  %v671 = vsel %vm669, %v665, 0
  %673 = vmatprep.subr.mxu0 0.0
  %674 = vmatpush1.msra.mxu0 0.0
  %675 = vmatprep.subr.mxu0 0.0
  %676 = vmatpush1.msra.mxu0 0.0
  %677 = vmatprep.subr.mxu0 0.0
  %678 = vmatpush1.msra.mxu0 0.0
  %679 = vmatprep.subr.mxu0 0.0
  %680 = vmatpush1.msra.mxu0 0.0
  %681 = vmatprep.subr.mxu0 0.0
  %682 = vmatpush1.msra.mxu0 0.0
  %683 = vmatprep.subr.mxu0 0.0
  %684 = vmatpush1.msra.mxu0 0.0
  %685 = vmatprep.subr.mxu0 0.0
  %686 = vmatpush1.msra.mxu0 0.0
  %687 = vmatprep.subr.mxu0 0.0
  %688 = vmatpush1.msra.mxu0 0.0
  %689 = vmatprep.subr.mxu0 0.0
  %690 = vmatpush1.msra.mxu0 0.0
  %691 = vmatprep.subr.mxu0 0.0
  %692 = vmatpush1.msra.mxu0 0.0
  %693 = vmatprep.subr.mxu0 0.0
  %694 = vmatpush1.msra.mxu0 0.0
  %695 = vmatprep.subr.mxu0 0.0
  %696 = vmatpush1.msra.mxu0 0.0
  %697 = vmatprep.subr.mxu0 0.0
  %698 = vmatpush1.msra.mxu0 0.0
  %699 = vmatprep.subr.mxu0 0.0
  %700 = vmatpush1.msra.mxu0 0.0
  %701 = vmatprep.subr.mxu0 0.0
  %702 = vmatpush1.msra.mxu0 0.0
  %703 = vmatprep.subr.mxu0 0.0
  %704 = vmatpush1.msra.mxu0 %v206
  %705 = vmatprep.subr.mxu0 0.0
  %706 = vmatpush2.msra.mxu0 0.0
  %707 = vmatprep.subr.mxu0 0.0
  %708 = vmatpush2.msra.mxu0 0.0
  %709 = vmatprep.subr.mxu0 0.0
  %710 = vmatpush2.msra.mxu0 0.0
  %711 = vmatprep.subr.mxu0 0.0
  %712 = vmatpush2.msra.mxu0 0.0
  %713 = vmatprep.subr.mxu0 0.0
  %714 = vmatpush2.msra.mxu0 0.0
  %715 = vmatprep.subr.mxu0 0.0
  %716 = vmatpush2.msra.mxu0 0.0
  %717 = vmatprep.subr.mxu0 0.0
  %718 = vmatpush2.msra.mxu0 0.0
  %719 = vmatprep.subr.mxu0 0.0
  %720 = vmatpush2.msra.mxu0 0.0
  %721 = vmatprep.subr.mxu0 0.0
  %722 = vmatpush2.msra.mxu0 0.0
  %723 = vmatprep.subr.mxu0 0.0
  %724 = vmatpush2.msra.mxu0 0.0
  %725 = vmatprep.subr.mxu0 0.0
  %726 = vmatpush2.msra.mxu0 0.0
  %727 = vmatprep.subr.mxu0 0.0
  %728 = vmatpush2.msra.mxu0 0.0
  %729 = vmatprep.subr.mxu0 0.0
  %730 = vmatpush2.msra.mxu0 0.0
  %731 = vmatprep.subr.mxu0 0.0
  %732 = vmatpush2.msra.mxu0 0.0
  %733 = vmatprep.subr.mxu0 0.0
  %734 = vmatpush2.msra.mxu0 0.0
  %735 = vmatprep.subr.mxu0 0.0
  %736 = vmatpush2.msra.mxu0 0.0
  %737 = vmatprep.mubr.f32.mxu0 0.0
  %738 = vmatmul.mubr.f32.gmra.mxu0 %v671
  %v739 = vpop.f32.mrf.mxu0
  %v740 = vadd.f32 0.0, %v739
  %v741 = vpop.f32.mrf.mxu0
  %742 = vdwg.mxu0
  %v744 = vsel %vm669, %v668, 0
  %746 = vmatprep.subr.mxu0 0.0
  %747 = vmatpush1.msra.mxu0 0.0
  %748 = vmatprep.subr.mxu0 0.0
  %749 = vmatpush1.msra.mxu0 0.0
  %750 = vmatprep.subr.mxu0 0.0
  %751 = vmatpush1.msra.mxu0 0.0
  %752 = vmatprep.subr.mxu0 0.0
  %753 = vmatpush1.msra.mxu0 0.0
  %754 = vmatprep.subr.mxu0 0.0
  %755 = vmatpush1.msra.mxu0 0.0
  %756 = vmatprep.subr.mxu0 0.0
  %757 = vmatpush1.msra.mxu0 0.0
  %758 = vmatprep.subr.mxu0 0.0
  %759 = vmatpush1.msra.mxu0 0.0
  %760 = vmatprep.subr.mxu0 0.0
  %761 = vmatpush1.msra.mxu0 0.0
  %762 = vmatprep.subr.mxu0 0.0
  %763 = vmatpush1.msra.mxu0 0.0
  %764 = vmatprep.subr.mxu0 0.0
  %765 = vmatpush1.msra.mxu0 0.0
  %766 = vmatprep.subr.mxu0 0.0
  %767 = vmatpush1.msra.mxu0 0.0
  %768 = vmatprep.subr.mxu0 0.0
  %769 = vmatpush1.msra.mxu0 0.0
  %770 = vmatprep.subr.mxu0 0.0
  %771 = vmatpush1.msra.mxu0 0.0
  %772 = vmatprep.subr.mxu0 0.0
  %773 = vmatpush1.msra.mxu0 0.0
  %774 = vmatprep.subr.mxu0 0.0
  %775 = vmatpush1.msra.mxu0 0.0
  %776 = vmatprep.subr.mxu0 0.0
  %777 = vmatpush1.msra.mxu0 %v206
  %778 = vmatprep.subr.mxu0 0.0
  %779 = vmatpush2.msra.mxu0 0.0
  %780 = vmatprep.subr.mxu0 0.0
  %781 = vmatpush2.msra.mxu0 0.0
  %782 = vmatprep.subr.mxu0 0.0
  %783 = vmatpush2.msra.mxu0 0.0
  %784 = vmatprep.subr.mxu0 0.0
  %785 = vmatpush2.msra.mxu0 0.0
  %786 = vmatprep.subr.mxu0 0.0
  %787 = vmatpush2.msra.mxu0 0.0
  %788 = vmatprep.subr.mxu0 0.0
  %789 = vmatpush2.msra.mxu0 0.0
  %790 = vmatprep.subr.mxu0 0.0
  %791 = vmatpush2.msra.mxu0 0.0
  %792 = vmatprep.subr.mxu0 0.0
  %793 = vmatpush2.msra.mxu0 0.0
  %794 = vmatprep.subr.mxu0 0.0
  %795 = vmatpush2.msra.mxu0 0.0
  %796 = vmatprep.subr.mxu0 0.0
  %797 = vmatpush2.msra.mxu0 0.0
  %798 = vmatprep.subr.mxu0 0.0
  %799 = vmatpush2.msra.mxu0 0.0
  %800 = vmatprep.subr.mxu0 0.0
  %801 = vmatpush2.msra.mxu0 0.0
  %802 = vmatprep.subr.mxu0 0.0
  %803 = vmatpush2.msra.mxu0 0.0
  %804 = vmatprep.subr.mxu0 0.0
  %805 = vmatpush2.msra.mxu0 0.0
  %806 = vmatprep.subr.mxu0 0.0
  %807 = vmatpush2.msra.mxu0 0.0
  %808 = vmatprep.subr.mxu0 0.0
  %809 = vmatpush2.msra.mxu0 0.0
  %810 = vmatprep.mubr.f32.mxu0 0.0
  %811 = vmatmul.mubr.f32.gmra.mxu0 %v744
  %v812 = vpop.f32.mrf.mxu0
  %v813 = vadd.f32 0.0, %v812
  %v814 = vpop.f32.mrf.mxu0
  %815 = vdwg.mxu0
  %v816 = vlaneseq
  %v817 = vshrl.u32 %v816, 7
  %v818 = vsub.s32 0, %v817
  %v819 = vrot.slane %v740, %v818
  %v820 = vmul.f32 %v489, %v819
  %v821 = vmul.f32 %v490, %v819
  %v822 = vlaneseq
  %v823 = vshrl.u32 %v822, 7
  %v824 = vsub.s32 0, %v823
  %v825 = vrot.slane %v813, %v824
  %v826 = vadd.f32 %v820, %v825
  %v827 = vadd.f32 %v821, %v825
  %v828 = vmax.f32 %v826, 0.0
  %v829 = vmax.f32 %v827, 0.0
  %v830 = vpack.c.bf16 %v828, %v828
  %v831 = vpack.c.bf16 %v829, %v829
  %v834 = vunpack.c.l.b16 %v830
  %v835 = vunpack.c.l.b16 %v831
  %v836 = vpack.c.b16 %v834, %v834
  %v837 = vpack.c.b16 %v835, %v835
  %v839 = vshrl.u32 %v836, 16
  %v841 = vrot.slane %v839, 7
  %v842 = vshll.u32 %v836, 16
  %v844 = vor.u32 %v841, %v842
  %v845 = vrot.slane %v841, 4
  %v847 = vshrl.u32 %v837, 16
  %v849 = vrot.slane %v847, 7
  %v850 = vshll.u32 %v837, 16
  %v852 = vor.u32 %v849, %v850
  %v853 = vrot.slane %v849, 4
  %vm858 = vcmask 519168
  %vm859 = vmand %vm858, %vm53
  %v860 = vsel %vm859, %v844, %v243
  %861 = vst [vmem:[#allocation2] sm:$0xf] %v860
  %v862 = vld [vmem:[#allocation2 + $0x4] sm:$0x1]
  %v863 = vsel %vm46, %v845, %v862
  %864 = vst [vmem:[#allocation2 + $0x4] sm:$0x1] %v863
  %v865 = vld [vmem:[#allocation2 + $0x8] sm:$0xf]
  %v866 = vsel %vm859, %v852, %v865
  %867 = vst [vmem:[#allocation2 + $0x8] sm:$0xf] %v866
  %v868 = vld [vmem:[#allocation2 + $0xc] sm:$0x1]
  %v869 = vsel %vm46, %v853, %v868
  %870 = vst [vmem:[#allocation2 + $0xc] sm:$0x1] %v869
  %v871 = vld [vmem:[#allocation2] sm:$0xf]
  %v872 = vld [vmem:[#allocation2 + $0x8] sm:$0xf]
  %v873 = vld [vmem:[%s4] sm:$0xf]
  %v874 = vld [vmem:[%s4 + $0x4] sm:$0xf]
  %v875 = vld [vmem:[%s4 + $0x8] sm:$0xf]
  %v876 = vld [vmem:[%s4 + $0xc] sm:$0xf]
  %v877 = vld [vmem:[%s4 + $0x10] sm:$0xf]
  %v878 = vld [vmem:[%s4 + $0x14] sm:$0xf]
  %v879 = vld [vmem:[%s4 + $0x18] sm:$0xf]
  %v880 = vld [vmem:[%s4 + $0x1c] sm:$0xf]
  %v881 = vld [vmem:[#allocation2 + $0x4] sm:$0x1]
  %v882 = vld [vmem:[#allocation2 + $0xc] sm:$0x1]
  %v884 = vshrl.u32 %v871, 16
  %v886 = vrot.slane %v884, 4
  %v887 = vshll.u32 %v871, 16
  %v889 = vrot.slane %v887, 5
  %v890 = vor.u32 %v886, %v889
  %v891 = vrot.slane %v890, 4
  %v893 = vshll.u32 %v881, 16
  %v895 = vrot.slane %v893, 5
  %v896 = vsel %vm253, %v891, %v895
  %v898 = vshrl.u32 %v872, 16
  %v900 = vrot.slane %v898, 4
  %v901 = vshll.u32 %v872, 16
  %v903 = vrot.slane %v901, 5
  %v904 = vor.u32 %v900, %v903
  %v905 = vrot.slane %v904, 4
  %v907 = vshll.u32 %v882, 16
  %v909 = vrot.slane %v907, 5
  %v910 = vsel %vm253, %v905, %v909
  %s911 = scalar_lea.vmem %s4, 32
  %v912 = vld [vmem:[%s911] sm:$0xf]
  %v913 = vld [vmem:[%s911 + $0x4] sm:$0xf]
  %v914 = vld [vmem:[%s911 + $0x8] sm:$0xf]
  %v915 = vld [vmem:[%s911 + $0xc] sm:$0xf]
  %v916 = vld [vmem:[%s911 + $0x10] sm:$0xf]
  %v917 = vld [vmem:[%s911 + $0x14] sm:$0xf]
  %v918 = vld [vmem:[%s911 + $0x18] sm:$0xf]
  %v919 = vld [vmem:[%s911 + $0x1c] sm:$0xf]
  %v920 = vunpack.c.l.b16 %v896
  %v921 = vunpack.c.l.b16 %v910
  %v922 = vpack.c.b16 %v921, %v920
  %v931 = vunpack.c.l.b16 %v912
  %v932 = vunpack.c.l.b16 %v913
  %v933 = vunpack.c.l.b16 %v914
  %v934 = vunpack.c.l.b16 %v915
  %v935 = vunpack.c.l.b16 %v916
  %v936 = vunpack.c.l.b16 %v917
  %v937 = vunpack.c.l.b16 %v918
  %v938 = vunpack.c.l.b16 %v919
  %v939 = vpack.c.b16 %v932, %v931
  %v940 = vpack.c.b16 %v934, %v933
  %v941 = vpack.c.b16 %v936, %v935
  %v942 = vpack.c.b16 %v938, %v937
  %v948 = vsel %vm491, %v922, 0
  %950 = vmatprep.subr.bf16.mxu0 0
  %951 = vmatpush1.bf16.msra.mxu0 0
  %952 = vmatprep.subr.bf16.mxu0 0
  %953 = vmatpush1.bf16.msra.mxu0 0
  %954 = vmatprep.subr.bf16.mxu0 0
  %955 = vmatpush1.bf16.msra.mxu0 0
  %956 = vmatprep.subr.bf16.mxu0 0
  %957 = vmatpush1.bf16.msra.mxu0 0
  %958 = vmatprep.subr.bf16.mxu0 0
  %959 = vmatpush1.bf16.msra.mxu0 %v942
  %960 = vmatprep.subr.bf16.mxu0 0
  %961 = vmatpush1.bf16.msra.mxu0 %v941
  %962 = vmatprep.subr.bf16.mxu0 0
  %963 = vmatpush1.bf16.msra.mxu0 %v940
  %964 = vmatprep.subr.bf16.mxu0 0
  %965 = vmatpush1.bf16.msra.mxu0 %v939
  %966 = vmatprep.subr.bf16.mxu0 0
  %967 = vmatpush2.bf16.msra.mxu0 0
  %968 = vmatprep.subr.bf16.mxu0 0
  %969 = vmatpush2.bf16.msra.mxu0 0
  %970 = vmatprep.subr.bf16.mxu0 0
  %971 = vmatpush2.bf16.msra.mxu0 0
  %972 = vmatprep.subr.bf16.mxu0 0
  %973 = vmatpush2.bf16.msra.mxu0 0
  %974 = vmatprep.subr.bf16.mxu0 0
  %975 = vmatpush2.bf16.msra.mxu0 0
  %976 = vmatprep.subr.bf16.mxu0 0
  %977 = vmatpush2.bf16.msra.mxu0 0
  %978 = vmatprep.subr.bf16.mxu0 0
  %979 = vmatpush2.bf16.msra.mxu0 0
  %980 = vmatprep.subr.bf16.mxu0 0
  %981 = vmatpush2.bf16.msra.mxu0 0
  %982 = vmatprep.mubr.bf16.mxu0 0
  %983 = vmatmul.mubr.bf16.gmra.mxu0 %v948
  %v984 = vpop.f32.mrf.mxu0
  %v985 = vadd.f32 0.0, %v984
  %v986 = vpop.f32.mrf.mxu0
  %v987 = vpop.f32.mrf.mxu0
  %v988 = vadd.f32 0.0, %v987
  %v989 = vpop.f32.mrf.mxu0
  %990 = vdwg.mxu0
  %v993 = vunpack.c.l.b16 %v871
  %v994 = vunpack.c.l.b16 %v872
  %v995 = vpack.c.b16 %v994, %v993
  %v1004 = vunpack.c.l.b16 %v873
  %v1005 = vunpack.c.l.b16 %v874
  %v1006 = vunpack.c.l.b16 %v875
  %v1007 = vunpack.c.l.b16 %v876
  %v1008 = vunpack.c.l.b16 %v877
  %v1009 = vunpack.c.l.b16 %v878
  %v1010 = vunpack.c.l.b16 %v879
  %v1011 = vunpack.c.l.b16 %v880
  %v1012 = vpack.c.b16 %v1005, %v1004
  %v1013 = vpack.c.b16 %v1007, %v1006
  %v1014 = vpack.c.b16 %v1009, %v1008
  %v1015 = vpack.c.b16 %v1011, %v1010
  %v1021 = vsel %vm491, %v995, 0
  %1023 = vmatprep.subr.bf16.mxu0 0
  %1024 = vmatpush1.bf16.msra.mxu0 0
  %1025 = vmatprep.subr.bf16.mxu0 0
  %1026 = vmatpush1.bf16.msra.mxu0 0
  %1027 = vmatprep.subr.bf16.mxu0 0
  %1028 = vmatpush1.bf16.msra.mxu0 0
  %1029 = vmatprep.subr.bf16.mxu0 0
  %1030 = vmatpush1.bf16.msra.mxu0 0
  %1031 = vmatprep.subr.bf16.mxu0 0
  %1032 = vmatpush1.bf16.msra.mxu0 %v1015
  %1033 = vmatprep.subr.bf16.mxu0 0
  %1034 = vmatpush1.bf16.msra.mxu0 %v1014
  %1035 = vmatprep.subr.bf16.mxu0 0
  %1036 = vmatpush1.bf16.msra.mxu0 %v1013
  %1037 = vmatprep.subr.bf16.mxu0 0
  %1038 = vmatpush1.bf16.msra.mxu0 %v1012
  %1039 = vmatprep.subr.bf16.mxu0 0
  %1040 = vmatpush2.bf16.msra.mxu0 0
  %1041 = vmatprep.subr.bf16.mxu0 0
  %1042 = vmatpush2.bf16.msra.mxu0 0
  %1043 = vmatprep.subr.bf16.mxu0 0
  %1044 = vmatpush2.bf16.msra.mxu0 0
  %1045 = vmatprep.subr.bf16.mxu0 0
  %1046 = vmatpush2.bf16.msra.mxu0 0
  %1047 = vmatprep.subr.bf16.mxu0 0
  %1048 = vmatpush2.bf16.msra.mxu0 0
  %1049 = vmatprep.subr.bf16.mxu0 0
  %1050 = vmatpush2.bf16.msra.mxu0 0
  %1051 = vmatprep.subr.bf16.mxu0 0
  %1052 = vmatpush2.bf16.msra.mxu0 0
  %1053 = vmatprep.subr.bf16.mxu0 0
  %1054 = vmatpush2.bf16.msra.mxu0 0
  %1055 = vmatprep.mubr.bf16.mxu0 0
  %1056 = vmatmul.mubr.bf16.gmra.mxu0 %v1021
  %v1057 = vpop.f32.mrf.mxu0
  %v1058 = vadd.f32 %v985, %v1057
  %v1059 = vpop.f32.mrf.mxu0
  %v1060 = vpop.f32.mrf.mxu0
  %v1061 = vadd.f32 %v988, %v1060
  %v1062 = vpop.f32.mrf.mxu0
  %1063 = vdwg.mxu0
  %v1064 = vld [vmem:[#allocation2] sm:$0xe]
  %v1065 = vld [vmem:[#allocation2 + $0x8] sm:$0xe]
  %v1070 = vrot.slane %v1064, 5
  %v1071 = vrot.slane %v1070, 4
  %v1072 = vrot.slane %v881, 5
  %v1073 = vsel %vm416, %v1071, %v1072
  %v1074 = vrot.slane %v1065, 5
  %v1075 = vrot.slane %v1074, 4
  %v1076 = vrot.slane %v882, 5
  %v1077 = vsel %vm416, %v1075, %v1076
  %s1078 = scalar_lea.vmem %s4, 64
  %v1079 = vld [vmem:[%s1078] sm:$0xf]
  %v1080 = vld [vmem:[%s1078 + $0x4] sm:$0xf]
  %v1081 = vld [vmem:[%s1078 + $0x8] sm:$0xf]
  %v1082 = vld [vmem:[%s1078 + $0xc] sm:$0xf]
  %v1083 = vld [vmem:[%s1078 + $0x10] sm:$0xf]
  %v1084 = vld [vmem:[%s1078 + $0x14] sm:$0xf]
  %v1085 = vld [vmem:[%s1078 + $0x18] sm:$0xf]
  %v1086 = vld [vmem:[%s1078 + $0x1c] sm:$0xf]
  %v1087 = vunpack.c.l.b16 %v1073
  %v1088 = vunpack.c.l.b16 %v1077
  %v1089 = vpack.c.b16 %v1088, %v1087
  %v1098 = vunpack.c.l.b16 %v1079
  %v1099 = vunpack.c.l.b16 %v1080
  %v1100 = vunpack.c.l.b16 %v1081
  %v1101 = vunpack.c.l.b16 %v1082
  %v1102 = vunpack.c.l.b16 %v1083
  %v1103 = vunpack.c.l.b16 %v1084
  %v1104 = vunpack.c.l.b16 %v1085
  %v1105 = vunpack.c.l.b16 %v1086
  %v1106 = vpack.c.b16 %v1099, %v1098
  %v1107 = vpack.c.b16 %v1101, %v1100
  %v1108 = vpack.c.b16 %v1103, %v1102
  %v1109 = vpack.c.b16 %v1105, %v1104
  %v1115 = vsel %vm491, %v1089, 0
  %1117 = vmatprep.subr.bf16.mxu0 0
  %1118 = vmatpush1.bf16.msra.mxu0 0
  %1119 = vmatprep.subr.bf16.mxu0 0
  %1120 = vmatpush1.bf16.msra.mxu0 0
  %1121 = vmatprep.subr.bf16.mxu0 0
  %1122 = vmatpush1.bf16.msra.mxu0 0
  %1123 = vmatprep.subr.bf16.mxu0 0
  %1124 = vmatpush1.bf16.msra.mxu0 0
  %1125 = vmatprep.subr.bf16.mxu0 0
  %1126 = vmatpush1.bf16.msra.mxu0 %v1109
  %1127 = vmatprep.subr.bf16.mxu0 0
  %1128 = vmatpush1.bf16.msra.mxu0 %v1108
  %1129 = vmatprep.subr.bf16.mxu0 0
  %1130 = vmatpush1.bf16.msra.mxu0 %v1107
  %1131 = vmatprep.subr.bf16.mxu0 0
  %1132 = vmatpush1.bf16.msra.mxu0 %v1106
  %1133 = vmatprep.subr.bf16.mxu0 0
  %1134 = vmatpush2.bf16.msra.mxu0 0
  %1135 = vmatprep.subr.bf16.mxu0 0
  %1136 = vmatpush2.bf16.msra.mxu0 0
  %1137 = vmatprep.subr.bf16.mxu0 0
  %1138 = vmatpush2.bf16.msra.mxu0 0
  %1139 = vmatprep.subr.bf16.mxu0 0
  %1140 = vmatpush2.bf16.msra.mxu0 0
  %1141 = vmatprep.subr.bf16.mxu0 0
  %1142 = vmatpush2.bf16.msra.mxu0 0
  %1143 = vmatprep.subr.bf16.mxu0 0
  %1144 = vmatpush2.bf16.msra.mxu0 0
  %1145 = vmatprep.subr.bf16.mxu0 0
  %1146 = vmatpush2.bf16.msra.mxu0 0
  %1147 = vmatprep.subr.bf16.mxu0 0
  %1148 = vmatpush2.bf16.msra.mxu0 0
  %1149 = vmatprep.mubr.bf16.mxu0 0
  %1150 = vmatmul.mubr.bf16.gmra.mxu0 %v1115
  %v1151 = vpop.f32.mrf.mxu0
  %v1152 = vadd.f32 0.0, %v1151
  %v1153 = vpop.f32.mrf.mxu0
  %v1154 = vpop.f32.mrf.mxu0
  %v1155 = vadd.f32 0.0, %v1154
  %v1156 = vpop.f32.mrf.mxu0
  %1157 = vdwg.mxu0
  %v1158 = vadd.f32 %v1058, %v1152
  %v1159 = vadd.f32 %v1061, %v1155
  %v1160 = vsel %vm491, %v1158, 0.0
  %v1161 = vsel %vm491, %v1159, 0.0
  %v1162 = vadd.f32 %v1160, %v1161
  %v1163 = vrot.slane %v1162, 4
  %v1164 = vadd.f32 %v1162, %v1163
  %v1165 = vrot.slane %v1164, 2
  %v1166 = vadd.f32 %v1164, %v1165
  %v1167 = vrot.slane %v1166, 1
  %v1168 = vadd.f32 %v1166, %v1167
  %v1170 = vsel %vm491, %v1168, 0
  %1172 = vmatprep.subr.mxu0 0.0
  %1173 = vmatpush1.msra.mxu0 0.0
  %1174 = vmatprep.subr.mxu0 0.0
  %1175 = vmatpush1.msra.mxu0 0.0
  %1176 = vmatprep.subr.mxu0 0.0
  %1177 = vmatpush1.msra.mxu0 0.0
  %1178 = vmatprep.subr.mxu0 0.0
  %1179 = vmatpush1.msra.mxu0 0.0
  %1180 = vmatprep.subr.mxu0 0.0
  %1181 = vmatpush1.msra.mxu0 0.0
  %1182 = vmatprep.subr.mxu0 0.0
  %1183 = vmatpush1.msra.mxu0 0.0
  %1184 = vmatprep.subr.mxu0 0.0
  %1185 = vmatpush1.msra.mxu0 0.0
  %1186 = vmatprep.subr.mxu0 0.0
  %1187 = vmatpush1.msra.mxu0 0.0
  %1188 = vmatprep.subr.mxu0 0.0
  %1189 = vmatpush1.msra.mxu0 %v191
  %1190 = vmatprep.subr.mxu0 0.0
  %1191 = vmatpush1.msra.mxu0 %v190
  %1192 = vmatprep.subr.mxu0 0.0
  %1193 = vmatpush1.msra.mxu0 %v189
  %1194 = vmatprep.subr.mxu0 0.0
  %1195 = vmatpush1.msra.mxu0 %v188
  %1196 = vmatprep.subr.mxu0 0.0
  %1197 = vmatpush1.msra.mxu0 %v187
  %1198 = vmatprep.subr.mxu0 0.0
  %1199 = vmatpush1.msra.mxu0 %v186
  %1200 = vmatprep.subr.mxu0 0.0
  %1201 = vmatpush1.msra.mxu0 %v185
  %1202 = vmatprep.subr.mxu0 0.0
  %1203 = vmatpush1.msra.mxu0 %v184
  %1204 = vmatprep.subr.mxu0 0.0
  %1205 = vmatpush2.msra.mxu0 0.0
  %1206 = vmatprep.subr.mxu0 0.0
  %1207 = vmatpush2.msra.mxu0 0.0
  %1208 = vmatprep.subr.mxu0 0.0
  %1209 = vmatpush2.msra.mxu0 0.0
  %1210 = vmatprep.subr.mxu0 0.0
  %1211 = vmatpush2.msra.mxu0 0.0
  %1212 = vmatprep.subr.mxu0 0.0
  %1213 = vmatpush2.msra.mxu0 0.0
  %1214 = vmatprep.subr.mxu0 0.0
  %1215 = vmatpush2.msra.mxu0 0.0
  %1216 = vmatprep.subr.mxu0 0.0
  %1217 = vmatpush2.msra.mxu0 0.0
  %1218 = vmatprep.subr.mxu0 0.0
  %1219 = vmatpush2.msra.mxu0 0.0
  %1220 = vmatprep.subr.mxu0 0.0
  %1221 = vmatpush2.msra.mxu0 0.0
  %1222 = vmatprep.subr.mxu0 0.0
  %1223 = vmatpush2.msra.mxu0 0.0
  %1224 = vmatprep.subr.mxu0 0.0
  %1225 = vmatpush2.msra.mxu0 0.0
  %1226 = vmatprep.subr.mxu0 0.0
  %1227 = vmatpush2.msra.mxu0 0.0
  %1228 = vmatprep.subr.mxu0 0.0
  %1229 = vmatpush2.msra.mxu0 0.0
  %1230 = vmatprep.subr.mxu0 0.0
  %1231 = vmatpush2.msra.mxu0 0.0
  %1232 = vmatprep.subr.mxu0 0.0
  %1233 = vmatpush2.msra.mxu0 0.0
  %1234 = vmatprep.subr.mxu0 0.0
  %1235 = vmatpush2.msra.mxu0 0.0
  %1236 = vmatprep.mubr.f32.mxu0 0.0
  %1237 = vmatmul.mubr.f32.gmra.mxu0 %v1170
  %v1238 = vpop.f32.mrf.mxu0
  %v1239 = vadd.f32 0.0, %v1238
  %v1240 = vpop.f32.mrf.mxu0
  %1241 = vdwg.mxu0
  %v1242 = vmul.f32 %v1158, %v1158
  %v1243 = vmul.f32 %v1159, %v1159
  %v1244 = vsel %vm491, %v1242, 0.0
  %v1245 = vsel %vm491, %v1243, 0.0
  %v1246 = vadd.f32 %v1244, %v1245
  %v1247 = vrot.slane %v1246, 4
  %v1248 = vadd.f32 %v1246, %v1247
  %v1249 = vrot.slane %v1248, 2
  %v1250 = vadd.f32 %v1248, %v1249
  %v1251 = vrot.slane %v1250, 1
  %v1252 = vadd.f32 %v1250, %v1251
  %v1254 = vsel %vm491, %v1252, 0
  %1256 = vmatprep.subr.mxu0 0.0
  %1257 = vmatpush1.msra.mxu0 0.0
  %1258 = vmatprep.subr.mxu0 0.0
  %1259 = vmatpush1.msra.mxu0 0.0
  %1260 = vmatprep.subr.mxu0 0.0
  %1261 = vmatpush1.msra.mxu0 0.0
  %1262 = vmatprep.subr.mxu0 0.0
  %1263 = vmatpush1.msra.mxu0 0.0
  %1264 = vmatprep.subr.mxu0 0.0
  %1265 = vmatpush1.msra.mxu0 0.0
  %1266 = vmatprep.subr.mxu0 0.0
  %1267 = vmatpush1.msra.mxu0 0.0
  %1268 = vmatprep.subr.mxu0 0.0
  %1269 = vmatpush1.msra.mxu0 0.0
  %1270 = vmatprep.subr.mxu0 0.0
  %1271 = vmatpush1.msra.mxu0 0.0
  %1272 = vmatprep.subr.mxu0 0.0
  %1273 = vmatpush1.msra.mxu0 %v191
  %1274 = vmatprep.subr.mxu0 0.0
  %1275 = vmatpush1.msra.mxu0 %v190
  %1276 = vmatprep.subr.mxu0 0.0
  %1277 = vmatpush1.msra.mxu0 %v189
  %1278 = vmatprep.subr.mxu0 0.0
  %1279 = vmatpush1.msra.mxu0 %v188
  %1280 = vmatprep.subr.mxu0 0.0
  %1281 = vmatpush1.msra.mxu0 %v187
  %1282 = vmatprep.subr.mxu0 0.0
  %1283 = vmatpush1.msra.mxu0 %v186
  %1284 = vmatprep.subr.mxu0 0.0
  %1285 = vmatpush1.msra.mxu0 %v185
  %1286 = vmatprep.subr.mxu0 0.0
  %1287 = vmatpush1.msra.mxu0 %v184
  %1288 = vmatprep.subr.mxu0 0.0
  %1289 = vmatpush2.msra.mxu0 0.0
  %1290 = vmatprep.subr.mxu0 0.0
  %1291 = vmatpush2.msra.mxu0 0.0
  %1292 = vmatprep.subr.mxu0 0.0
  %1293 = vmatpush2.msra.mxu0 0.0
  %1294 = vmatprep.subr.mxu0 0.0
  %1295 = vmatpush2.msra.mxu0 0.0
  %1296 = vmatprep.subr.mxu0 0.0
  %1297 = vmatpush2.msra.mxu0 0.0
  %1298 = vmatprep.subr.mxu0 0.0
  %1299 = vmatpush2.msra.mxu0 0.0
  %1300 = vmatprep.subr.mxu0 0.0
  %1301 = vmatpush2.msra.mxu0 0.0
  %1302 = vmatprep.subr.mxu0 0.0
  %1303 = vmatpush2.msra.mxu0 0.0
  %1304 = vmatprep.subr.mxu0 0.0
  %1305 = vmatpush2.msra.mxu0 0.0
  %1306 = vmatprep.subr.mxu0 0.0
  %1307 = vmatpush2.msra.mxu0 0.0
  %1308 = vmatprep.subr.mxu0 0.0
  %1309 = vmatpush2.msra.mxu0 0.0
  %1310 = vmatprep.subr.mxu0 0.0
  %1311 = vmatpush2.msra.mxu0 0.0
  %1312 = vmatprep.subr.mxu0 0.0
  %1313 = vmatpush2.msra.mxu0 0.0
  %1314 = vmatprep.subr.mxu0 0.0
  %1315 = vmatpush2.msra.mxu0 0.0
  %1316 = vmatprep.subr.mxu0 0.0
  %1317 = vmatpush2.msra.mxu0 0.0
  %1318 = vmatprep.subr.mxu0 0.0
  %1319 = vmatpush2.msra.mxu0 0.0
  %1320 = vmatprep.mubr.f32.mxu0 0.0
  %1321 = vmatmul.mubr.f32.gmra.mxu0 %v1254
  %v1322 = vpop.f32.mrf.mxu0
  %v1323 = vadd.f32 0.0, %v1322
  %v1324 = vpop.f32.mrf.mxu0
  %1325 = vdwg.mxu0
  %v1326 = vmul.f32 %v1239, 0.0078125
  %v1327 = vmul.f32 %v1323, 0.0078125
  %v1328 = vmul.f32 %v1326, %v1326
  %v1329 = vsub.f32 %v1327, %v1328
  %v1330 = vld [vmem:[%s5] sm:$0x1]
  %v1331 = vadd.f32 %v1329, 1e-05
  %v1332 = vrsqrt.pop %v1331
  %v1333 = vmul.f32 %v1330, %v1332
  %v1334 = vld [vmem:[%s6] sm:$0x1]
  %v1335 = vmul.f32 %v1326, %v1333
  %v1336 = vsub.f32 %v1334, %v1335
  %v1338 = vsel %vm669, %v1333, 0
  %1340 = vmatprep.subr.mxu0 0.0
  %1341 = vmatpush1.msra.mxu0 0.0
  %1342 = vmatprep.subr.mxu0 0.0
  %1343 = vmatpush1.msra.mxu0 0.0
  %1344 = vmatprep.subr.mxu0 0.0
  %1345 = vmatpush1.msra.mxu0 0.0
  %1346 = vmatprep.subr.mxu0 0.0
  %1347 = vmatpush1.msra.mxu0 0.0
  %1348 = vmatprep.subr.mxu0 0.0
  %1349 = vmatpush1.msra.mxu0 0.0
  %1350 = vmatprep.subr.mxu0 0.0
  %1351 = vmatpush1.msra.mxu0 0.0
  %1352 = vmatprep.subr.mxu0 0.0
  %1353 = vmatpush1.msra.mxu0 0.0
  %1354 = vmatprep.subr.mxu0 0.0
  %1355 = vmatpush1.msra.mxu0 0.0
  %1356 = vmatprep.subr.mxu0 0.0
  %1357 = vmatpush1.msra.mxu0 0.0
  %1358 = vmatprep.subr.mxu0 0.0
  %1359 = vmatpush1.msra.mxu0 0.0
  %1360 = vmatprep.subr.mxu0 0.0
  %1361 = vmatpush1.msra.mxu0 0.0
  %1362 = vmatprep.subr.mxu0 0.0
  %1363 = vmatpush1.msra.mxu0 0.0
  %1364 = vmatprep.subr.mxu0 0.0
  %1365 = vmatpush1.msra.mxu0 0.0
  %1366 = vmatprep.subr.mxu0 0.0
  %1367 = vmatpush1.msra.mxu0 0.0
  %1368 = vmatprep.subr.mxu0 0.0
  %1369 = vmatpush1.msra.mxu0 0.0
  %1370 = vmatprep.subr.mxu0 0.0
  %1371 = vmatpush1.msra.mxu0 %v206
  %1372 = vmatprep.subr.mxu0 0.0
  %1373 = vmatpush2.msra.mxu0 0.0
  %1374 = vmatprep.subr.mxu0 0.0
  %1375 = vmatpush2.msra.mxu0 0.0
  %1376 = vmatprep.subr.mxu0 0.0
  %1377 = vmatpush2.msra.mxu0 0.0
  %1378 = vmatprep.subr.mxu0 0.0
  %1379 = vmatpush2.msra.mxu0 0.0
  %1380 = vmatprep.subr.mxu0 0.0
  %1381 = vmatpush2.msra.mxu0 0.0
  %1382 = vmatprep.subr.mxu0 0.0
  %1383 = vmatpush2.msra.mxu0 0.0
  %1384 = vmatprep.subr.mxu0 0.0
  %1385 = vmatpush2.msra.mxu0 0.0
  %1386 = vmatprep.subr.mxu0 0.0
  %1387 = vmatpush2.msra.mxu0 0.0
  %1388 = vmatprep.subr.mxu0 0.0
  %1389 = vmatpush2.msra.mxu0 0.0
  %1390 = vmatprep.subr.mxu0 0.0
  %1391 = vmatpush2.msra.mxu0 0.0
  %1392 = vmatprep.subr.mxu0 0.0
  %1393 = vmatpush2.msra.mxu0 0.0
  %1394 = vmatprep.subr.mxu0 0.0
  %1395 = vmatpush2.msra.mxu0 0.0
  %1396 = vmatprep.subr.mxu0 0.0
  %1397 = vmatpush2.msra.mxu0 0.0
  %1398 = vmatprep.subr.mxu0 0.0
  %1399 = vmatpush2.msra.mxu0 0.0
  %1400 = vmatprep.subr.mxu0 0.0
  %1401 = vmatpush2.msra.mxu0 0.0
  %1402 = vmatprep.subr.mxu0 0.0
  %1403 = vmatpush2.msra.mxu0 0.0
  %1404 = vmatprep.mubr.f32.mxu0 0.0
  %1405 = vmatmul.mubr.f32.gmra.mxu0 %v1338
  %v1406 = vpop.f32.mrf.mxu0
  %v1407 = vadd.f32 0.0, %v1406
  %v1408 = vpop.f32.mrf.mxu0
  %1409 = vdwg.mxu0
  %v1411 = vsel %vm669, %v1336, 0
  %1413 = vmatprep.subr.mxu0 0.0
  %1414 = vmatpush1.msra.mxu0 0.0
  %1415 = vmatprep.subr.mxu0 0.0
  %1416 = vmatpush1.msra.mxu0 0.0
  %1417 = vmatprep.subr.mxu0 0.0
  %1418 = vmatpush1.msra.mxu0 0.0
  %1419 = vmatprep.subr.mxu0 0.0
  %1420 = vmatpush1.msra.mxu0 0.0
  %1421 = vmatprep.subr.mxu0 0.0
  %1422 = vmatpush1.msra.mxu0 0.0
  %1423 = vmatprep.subr.mxu0 0.0
  %1424 = vmatpush1.msra.mxu0 0.0
  %1425 = vmatprep.subr.mxu0 0.0
  %1426 = vmatpush1.msra.mxu0 0.0
  %1427 = vmatprep.subr.mxu0 0.0
  %1428 = vmatpush1.msra.mxu0 0.0
  %1429 = vmatprep.subr.mxu0 0.0
  %1430 = vmatpush1.msra.mxu0 0.0
  %1431 = vmatprep.subr.mxu0 0.0
  %1432 = vmatpush1.msra.mxu0 0.0
  %1433 = vmatprep.subr.mxu0 0.0
  %1434 = vmatpush1.msra.mxu0 0.0
  %1435 = vmatprep.subr.mxu0 0.0
  %1436 = vmatpush1.msra.mxu0 0.0
  %1437 = vmatprep.subr.mxu0 0.0
  %1438 = vmatpush1.msra.mxu0 0.0
  %1439 = vmatprep.subr.mxu0 0.0
  %1440 = vmatpush1.msra.mxu0 0.0
  %1441 = vmatprep.subr.mxu0 0.0
  %1442 = vmatpush1.msra.mxu0 0.0
  %1443 = vmatprep.subr.mxu0 0.0
  %1444 = vmatpush1.msra.mxu0 %v206
  %1445 = vmatprep.subr.mxu0 0.0
  %1446 = vmatpush2.msra.mxu0 0.0
  %1447 = vmatprep.subr.mxu0 0.0
  %1448 = vmatpush2.msra.mxu0 0.0
  %1449 = vmatprep.subr.mxu0 0.0
  %1450 = vmatpush2.msra.mxu0 0.0
  %1451 = vmatprep.subr.mxu0 0.0
  %1452 = vmatpush2.msra.mxu0 0.0
  %1453 = vmatprep.subr.mxu0 0.0
  %1454 = vmatpush2.msra.mxu0 0.0
  %1455 = vmatprep.subr.mxu0 0.0
  %1456 = vmatpush2.msra.mxu0 0.0
  %1457 = vmatprep.subr.mxu0 0.0
  %1458 = vmatpush2.msra.mxu0 0.0
  %1459 = vmatprep.subr.mxu0 0.0
  %1460 = vmatpush2.msra.mxu0 0.0
  %1461 = vmatprep.subr.mxu0 0.0
  %1462 = vmatpush2.msra.mxu0 0.0
  %1463 = vmatprep.subr.mxu0 0.0
  %1464 = vmatpush2.msra.mxu0 0.0
  %1465 = vmatprep.subr.mxu0 0.0
  %1466 = vmatpush2.msra.mxu0 0.0
  %1467 = vmatprep.subr.mxu0 0.0
  %1468 = vmatpush2.msra.mxu0 0.0
  %1469 = vmatprep.subr.mxu0 0.0
  %1470 = vmatpush2.msra.mxu0 0.0
  %1471 = vmatprep.subr.mxu0 0.0
  %1472 = vmatpush2.msra.mxu0 0.0
  %1473 = vmatprep.subr.mxu0 0.0
  %1474 = vmatpush2.msra.mxu0 0.0
  %1475 = vmatprep.subr.mxu0 0.0
  %1476 = vmatpush2.msra.mxu0 0.0
  %1477 = vmatprep.mubr.f32.mxu0 0.0
  %1478 = vmatmul.mubr.f32.gmra.mxu0 %v1411
  %v1479 = vpop.f32.mrf.mxu0
  %v1480 = vadd.f32 0.0, %v1479
  %v1481 = vpop.f32.mrf.mxu0
  %1482 = vdwg.mxu0
  %v1483 = vlaneseq
  %v1484 = vshrl.u32 %v1483, 7
  %v1485 = vsub.s32 0, %v1484
  %v1486 = vrot.slane %v1407, %v1485
  %v1487 = vmul.f32 %v1158, %v1486
  %v1488 = vmul.f32 %v1159, %v1486
  %v1489 = vlaneseq
  %v1490 = vshrl.u32 %v1489, 7
  %v1491 = vsub.s32 0, %v1490
  %v1492 = vrot.slane %v1480, %v1491
  %v1493 = vadd.f32 %v1487, %v1492
  %v1494 = vadd.f32 %v1488, %v1492
  %v1495 = vmax.f32 %v1493, 0.0
  %v1496 = vmax.f32 %v1494, 0.0
  %1497 = vst.msk [vmem:[%s7] sm:$0xff] %vm491, %v1495
  %1498 = vst.msk [vmem:[%s7 + $0x8] sm:$0xff] %vm491, %v1496
  // Predicated region
  $region30: #{down_forward.1} parent=0 // pred_check
    _
  $region31: #{down_forward.1} parent=0 // pred_check_branch
    %1500 = sbr.rel (0) target = $region33
  $region32: #{down_forward.1} parent=0 // pred_region
    _
  $region33: #{down_forward.1} parent=0 // pred_fallthru
    _
  // Predicated region
  $region34: #{down_forward.1} parent=0 // pred_check
    _
  $region35: #{down_forward.1} parent=0 // pred_check_branch
    %1502 = sbr.rel (0) target = $region37
  $region36: #{down_forward.1} parent=0 // pred_region
    _
  $region37: #{down_forward.1} parent=0 // pred_fallthru
    _

</llo_original>
